<compile_context>
chip_gen: v7x
topology: tpu7x:2x2x1
jax: 0.10.0
libtpu: 0.0.40
codegen_flags: <defaults>
</compile_context>

<pallas_src>
import functools

import jax
import jax.numpy as jnp
from jax.experimental import pallas as pl
from jax.experimental.pallas import tpu as pltpu

_BN_EPS = 1e-5


def _round_up(n, m):
    return ((n + m - 1) // m) * m


@functools.lru_cache(maxsize=1)
def _vmem_limit_bytes():
    # Generation-aware cap: ~75% of physical VMEM (96 MiB on v5e/v6e, 48 MiB on v7x).
    try:
        cap = int(pltpu.get_tpu_info().vmem_capacity_bytes)
        return (cap * 3) // 4
    except Exception:
        return None  # interpret mode / no TPU: use the compiler default


# ---------------------------------------------------------------------------
# Fused Conv2d(3x3, stride=1, padding=dilation, dilation) + bias/BN + ReLU
# ---------------------------------------------------------------------------
def _conv_bias_relu_kernel(x_ref, w_ref, b_ref, o_ref, *, tile_h, out_w, kh_taps,
                           dilation):
    """One grid step = (batch n, cout tile c, output-row tile r).

    x_ref : (1, Hf, out_w, KW*Cin)   bf16 W-folded, zero-padded image (resident over c, r)
    w_ref : (KH, KW*Cin, tile_c)     bf16 weights with BN folded in
    b_ref : (1, tile_c)              f32 fused bias (conv bias + folded BN shift)
    o_ref : (1, tile_h, out_w, tile_c)
    """
    row0 = pl.program_id(2) * tile_h            # conv stride 1 -> out row == in row offset
    kwcin = x_ref.shape[-1]
    acc = None
    for kh in range(kh_taps):                   # KH matmuls, f32 accumulation in vregs
        patch = x_ref[0, pl.ds(row0 + kh * dilation, tile_h), :, :]
        patch = patch.reshape(tile_h * out_w, kwcin)       # free retile: out_w % 8 == 0
        contrib = jnp.dot(patch, w_ref[kh], preferred_element_type=jnp.float32)
        acc = contrib if acc is None else acc + contrib
    y = jnp.maximum(acc + b_ref[...], 0.0)                 # bias (+BN) + ReLU
    o_ref[...] = y.reshape(1, tile_h, out_w, -1).astype(o_ref.dtype)


def _conv3x3_bn_relu(x_nhwc, w_oihw, bias, scale, shift, *, dilation,
                     target_rows=128, out_channel_tile=128):
    """conv(stride=1, padding=dilation, dilation) -> *scale + shift -> ReLU.  NHWC, bf16 out."""
    N, H, W, Cin = x_nhwc.shape
    Cout, Cin_w, KH, KW = w_oihw.shape
    assert Cin == Cin_w
    pad = dilation                                   # module uses padding == dilation
    out_h = H + 2 * pad - dilation * (KH - 1)        # == H for the 3x3 / pad==dilation case
    out_w = W + 2 * pad - dilation * (KW - 1)        # == W

    # Fold the (eval-mode) BN affine into the conv weights / bias.
    w_eff = (w_oihw * scale[:, None, None, None]).astype(jnp.float32)
    b_eff = (bias * scale + shift).astype(jnp.float32)

    # --- tiling --------------------------------------------------------------
    out_w_pad = _round_up(out_w, 8)                  # sublane-aligned row width
    tile_h = max(1, min(out_h, max(1, target_rows // out_w_pad)))
    grid_r = pl.cdiv(out_h, tile_h)
    out_h_pad = grid_r * tile_h                      # ragged heights handled by padding
    if Cout <= out_channel_tile:
        tile_c, cout_pad = Cout, Cout
    else:
        tile_c = out_channel_tile                    # lane-dense (multiple of 128)
        cout_pad = _round_up(Cout, tile_c)

    if cout_pad != Cout:
        w_eff = jnp.pad(w_eff, ((0, cout_pad - Cout), (0, 0), (0, 0), (0, 0)))
        b_eff = jnp.pad(b_eff, ((0, cout_pad - Cout),))

    # OIHW -> (KH, KW, Cin, Cout) -> (KH, KW*Cin, Cout): KW folded into the contraction dim.
    w_folded = jnp.transpose(w_eff, (2, 3, 1, 0)).reshape(KH, KW * Cin, cout_pad)
    w_folded = w_folded.astype(jnp.bfloat16)
    b2 = b_eff.reshape(1, cout_pad)

    # --- pad + W-only im2col in the wrapper (bf16) ----------------------------
    # Extra bottom/right zero rows/cols only feed output positions that get stripped.
    xp = jnp.pad(
        x_nhwc.astype(jnp.bfloat16),
        ((0, 0),
         (pad, pad + (out_h_pad - out_h)),
         (pad, pad + (out_w_pad - out_w)),
         (0, 0)))
    # x_fold[n, h, w, kw*Cin + c] = xp[n, h, w + kw*dilation, c]
    x_fold = jnp.concatenate(
        [xp[:, :, kw * dilation: kw * dilation + out_w_pad, :] for kw in range(KW)],
        axis=-1)
    Hf = x_fold.shape[1]                             # = out_h_pad + 2*dilation

    kernel = functools.partial(
        _conv_bias_relu_kernel, tile_h=tile_h, out_w=out_w_pad,
        kh_taps=KH, dilation=dilation)

    # TODO(synk): stream halo'd row windows with manual DMA (memory_space=pl.ANY) for very
    # large images instead of keeping the whole folded image resident per batch element
    # (or at least pipeline_mode=pl.Buffered(1) on x, whose block only changes with n).
    y = pl.pallas_call(
        kernel,
        out_shape=jax.ShapeDtypeStruct((N, out_h_pad, out_w_pad, cout_pad), jnp.bfloat16),
        grid=(N, cout_pad // tile_c, grid_r),
        in_specs=[
            pl.BlockSpec((1, Hf, out_w_pad, KW * Cin), lambda n, c, r: (n, 0, 0, 0)),
            pl.BlockSpec((KH, KW * Cin, tile_c), lambda n, c, r: (0, 0, c)),
            pl.BlockSpec((1, tile_c), lambda n, c, r: (0, c)),
        ],
        out_specs=pl.BlockSpec((1, tile_h, out_w_pad, tile_c),
                               lambda n, c, r: (n, r, 0, c)),
        compiler_params=pltpu.CompilerParams(
            dimension_semantics=("parallel", "parallel", "parallel"),
            vmem_limit_bytes=_vmem_limit_bytes()),
    )(x_fold, w_folded, b2)
    return y[:, :out_h, :out_w, :Cout]               # strip alignment padding


# ---------------------------------------------------------------------------
# MaxPool2d(kernel=3, stride, padding=1)
# ---------------------------------------------------------------------------
def _maxpool_kernel(x_ref, o_ref, *, k, stride, tile_oh, out_w, cin):
    """One grid step = (batch n, output-row tile r).

    x_ref : (1, Hp, Wq, stride*C) bf16; W stride-phases folded into channels:
            x_ref[0, h, j, q*C + c] == padded_input[h, j*stride + q, c]
    o_ref : (1, tile_oh, out_w, C)
    """
    row0 = pl.program_id(1) * (tile_oh * stride)
    rows_in = tile_oh * stride + (k - 1)
    v = x_ref[0, pl.ds(row0, rows_in), :, :]
    # Column (W) direction: every tap is a unit-stride slice of the phase-folded input.
    colmax = None
    for m in range(k):
        q, shift = m % stride, m // stride
        tap = v[:, shift: shift + out_w, q * cin: (q + 1) * cin]
        colmax = tap if colmax is None else jnp.maximum(colmax, tap)
    # Row (H) direction: contiguous taps, then pick every stride-th row with a free
    # leading-dim reshape -- no strided or sublane-shuffling loads anywhere.
    hc = tile_oh * stride
    rowmax = colmax[0:hc]
    for p in range(1, k):
        rowmax = jnp.maximum(rowmax, colmax[p: p + hc])
    out = rowmax.reshape(tile_oh, stride, out_w, cin)[:, 0]
    o_ref[...] = out.reshape(1, tile_oh, out_w, cin).astype(o_ref.dtype)


def _maxpool3x3(x_nhwc, *, stride, out_dtype, target_rows=128):
    """MaxPool2d(3, stride, padding=1).  Input is post-ReLU (>= 0), so zero padding is
    equivalent to torch's -inf padding for every kept output window."""
    N, H, W, C = x_nhwc.shape
    k, pad = 3, 1
    out_h = (H + 2 * pad - k) // stride + 1
    out_w = (W + 2 * pad - k) // stride + 1

    tile_oh = max(1, min(out_h, max(1, target_rows // max(1, out_w))))
    grid_r = pl.cdiv(out_h, tile_oh)
    out_h_pad = grid_r * tile_oh

    rows_needed = out_h_pad * stride + (k - 1)
    wq = out_w + (k - 1) // stride                   # phase-folded width
    cols_needed = max(W + 2 * pad, wq * stride)

    xp = jnp.pad(x_nhwc.astype(jnp.bfloat16),
                 ((0, 0),
                  (pad, rows_needed - H - pad),
                  (pad, cols_needed - W - pad),
                  (0, 0)))
    # Fold the `stride` column phases into the channel dim (pure XLA reshape):
    # xf[n, h, j, q*C + c] = xp[n, h, j*stride + q, c]
    xf = xp[:, :, :wq * stride, :].reshape(N, rows_needed, wq, stride * C)

    kernel = functools.partial(_maxpool_kernel, k=k, stride=stride,
                               tile_oh=tile_oh, out_w=out_w, cin=C)
    # TODO(synk): fuse this pool into the last conv layer's epilogue to avoid one full
    # HBM round trip of the largest activation tensor.
    y = pl.pallas_call(
        kernel,
        out_shape=jax.ShapeDtypeStruct((N, out_h_pad, out_w, C), out_dtype),
        grid=(N, grid_r),
        in_specs=[pl.BlockSpec((1, rows_needed, wq, stride * C),
                               lambda n, r: (n, 0, 0, 0))],
        out_specs=pl.BlockSpec((1, tile_oh, out_w, C), lambda n, r: (n, r, 0, 0)),
        compiler_params=pltpu.CompilerParams(
            dimension_semantics=("parallel", "parallel"),
            vmem_limit_bytes=_vmem_limit_bytes()),
    )(xf)
    return y[:, :out_h]


# ---------------------------------------------------------------------------
# Full _Conv forward (PyTorch NCHW in/out). BN uses running stats (eval mode).
# ---------------------------------------------------------------------------
@functools.partial(jax.jit, static_argnames=("is_bn", "pool_stride", "dilation"))
def conv_block_forward(x_nchw, conv_ws, conv_bs, bn, *, is_bn, pool_stride, dilation):
    out_dtype = x_nchw.dtype
    x = jnp.transpose(x_nchw, (0, 2, 3, 1))          # NCHW -> NHWC once
    cout = conv_ws[0].shape[0]
    ones = jnp.ones((cout,), jnp.float32)
    zeros = jnp.zeros((cout,), jnp.float32)
    bn_scale = bn["gamma"] * jax.lax.rsqrt(bn["var"] + _BN_EPS)
    bn_shift = bn["beta"] - bn["mean"] * bn_scale
    for idx in range(len(conv_ws)):
        use_bn = is_bn and idx > 0                   # forward applies BN only for idx > 0
        scale = bn_scale if use_bn else ones
        shift = bn_shift if use_bn else zeros
        x = _conv3x3_bn_relu(x, conv_ws[idx], conv_bs[idx], scale, shift,
                             dilation=dilation)
    x = _maxpool3x3(x, stride=pool_stride, out_dtype=out_dtype)
    return jnp.transpose(x, (0, 3, 1, 2))            # back to NCHW


# ---------------------------------------------------------------------------
# Pure-JAX reference
# ---------------------------------------------------------------------------
def _reference_forward(x_nchw, conv_ws, conv_bs, bn, *, is_bn, pool_stride, dilation):
    y = x_nchw
    bn_scale = bn["gamma"] / jnp.sqrt(bn["var"] + _BN_EPS)
    bn_shift = bn["beta"] - bn["mean"] * bn_scale
    for idx in range(len(conv_ws)):
        y = jax.lax.conv_general_dilated(
            y, conv_ws[idx], window_strides=(1, 1),
            padding=((dilation, dilation), (dilation, dilation)),
            rhs_dilation=(dilation, dilation),
            dimension_numbers=("NCHW", "OIHW", "NCHW"))
        y = y + conv_bs[idx].reshape(1, -1, 1, 1)
        if is_bn and idx > 0:
            y = y * bn_scale.reshape(1, -1, 1, 1) + bn_shift.reshape(1, -1, 1, 1)
        y = jnp.maximum(y, 0.0)
    y = jax.lax.reduce_window(
        y, -jnp.inf, jax.lax.max,
        window_dimensions=(1, 1, 3, 3),
        window_strides=(1, 1, pool_stride, pool_stride),
        padding=((0, 0), (0, 0), (1, 1), (1, 1)))
    return y


if __name__ == "__main__":
    def make_params(key, cin, cout, layer_num):
        ws, bs = [], []
        c = cin
        for _ in range(layer_num):
            key, kw_, kb_ = jax.random.split(key, 3)
            ws.append(jax.random.normal(kw_, (cout, c, 3, 3), jnp.float32) * 0.1)
            bs.append(jax.random.normal(kb_, (cout,), jnp.float32) * 0.1)
            c = cout
        key, k1, k2, k3, k4 = jax.random.split(key, 5)
        bn = dict(
            gamma=1.0 + 0.1 * jax.random.normal(k1, (cout,), jnp.float32),
            beta=0.1 * jax.random.normal(k2, (cout,), jnp.float32),
            mean=0.1 * jax.random.normal(k3, (cout,), jnp.float32),
            var=jax.random.uniform(k4, (cout,), jnp.float32, 0.5, 1.5),
        )
        return tuple(ws), tuple(bs), bn, key

    root = jax.random.PRNGKey(0)

    # Config 1: _Conv(4, 8, layer_num=2, is_bn=True, stride=2, dilation=1), x (2,4,16,16)
    root, kx1 = jax.random.split(root)
    x1 = jax.random.normal(kx1, (2, 4, 16, 16), jnp.float32)
    ws1, bs1, bn1, root = make_params(root, 4, 8, 2)
    out1 = jax.block_until_ready(
        conv_block_forward(x1, ws1, bs1, bn1, is_bn=True, pool_stride=2, dilation=1))
    ref1 = _reference_forward(x1, ws1, bs1, bn1, is_bn=True, pool_stride=2, dilation=1)
    assert out1.shape == ref1.shape == (2, 8, 8, 8)
    assert jnp.allclose(out1, ref1, rtol=5e-2, atol=5e-2), \
        float(jnp.max(jnp.abs(out1 - ref1)))

    # Config 2: _Conv(3, 8, layer_num=1, is_bn=False, stride=2, dilation=2), x (1,3,12,12)
    root, kx2 = jax.random.split(root)
    x2 = jax.random.normal(kx2, (1, 3, 12, 12), jnp.float32)
    ws2, bs2, bn2, root = make_params(root, 3, 8, 1)
    out2 = jax.block_until_ready(
        conv_block_forward(x2, ws2, bs2, bn2, is_bn=False, pool_stride=2, dilation=2))
    ref2 = _reference_forward(x2, ws2, bs2, bn2, is_bn=False, pool_stride=2, dilation=2)
    assert out2.shape == ref2.shape == (1, 8, 6, 6)
    assert jnp.allclose(out2, ref2, rtol=5e-2, atol=5e-2), \
        float(jnp.max(jnp.abs(out2 - ref2)))

    print("KERNEL_OK")
</pallas_src>

<mosaic_0001>
module attributes {stable_mosaic.version = 11 : i64} {
  func.func @_conv_bias_relu_kernel(%arg0: i32, %arg1: i32, %arg2: i32, %arg3: memref<1x18x16x12xbf16, #tpu.memory_space<vmem>>, %arg4: memref<3x12x8xbf16, #tpu.memory_space<vmem>>, %arg5: memref<1x8xf32, #tpu.memory_space<vmem>>, %arg6: memref<1x8x16x8xbf16, #tpu.memory_space<vmem>>) attributes {dimension_semantics = [#tpu.dimension_semantics<parallel>, #tpu.dimension_semantics<parallel>, #tpu.dimension_semantics<parallel>], iteration_bounds = array<i64: 2, 1, 2>, scalar_prefetch = 0 : i64, scratch_operands = 0 : i64, tpu.core_type = #tpu.core_type<tc>, window_params = [{transform_indices = @transform_0, window_bounds = array<i64: 1, 18, 16, 12>}, {transform_indices = @transform_1, window_bounds = array<i64: 3, 12, 8>}, {transform_indices = @transform_2, window_bounds = array<i64: 1, 8>}, {transform_indices = @transform_3, window_bounds = array<i64: 1, 8, 16, 8>}]} {
    %c8_i32 = arith.constant 8 : i32
    %0 = arith.muli %arg2, %c8_i32 : i32
    %c0_i32 = arith.constant 0 : i32
    %1 = arith.addi %0, %c0_i32 : i32
    %c0 = arith.constant 0 : index
    %2 = arith.index_cast %1 : i32 to index
    %c0_0 = arith.constant 0 : index
    %c0_1 = arith.constant 0 : index
    %3 = vector.load %arg3[%c0, %2, %c0_0, %c0_1] : memref<1x18x16x12xbf16, #tpu.memory_space<vmem>>, vector<1x8x16x12xbf16>
    %4 = vector.shape_cast %3 : vector<1x8x16x12xbf16> to vector<8x16x12xbf16>
    %5 = vector.shape_cast %4 : vector<8x16x12xbf16> to vector<128x12xbf16>
    %c0_2 = arith.constant 0 : index
    %c0_3 = arith.constant 0 : index
    %c0_4 = arith.constant 0 : index
    %6 = vector.load %arg4[%c0_2, %c0_3, %c0_4] : memref<3x12x8xbf16, #tpu.memory_space<vmem>>, vector<1x12x8xbf16>
    %7 = vector.shape_cast %6 : vector<1x12x8xbf16> to vector<12x8xbf16>
    %cst = arith.constant dense<0.000000e+00> : vector<128x8xf32>
    %8 = tpu.matmul %5, %7, %cst {dimension_numbers = #tpu.dot_dimension_numbers<[1], [0], [0], [1], [0, 0, 1, 1], [], []>} : vector<128x12xbf16>, vector<12x8xbf16>, vector<128x8xf32> -> vector<128x8xf32>
    %c1_i32 = arith.constant 1 : i32
    %9 = arith.addi %0, %c1_i32 : i32
    %c0_5 = arith.constant 0 : index
    %10 = arith.index_cast %9 : i32 to index
    %c0_6 = arith.constant 0 : index
    %c0_7 = arith.constant 0 : index
    %11 = vector.load %arg3[%c0_5, %10, %c0_6, %c0_7] : memref<1x18x16x12xbf16, #tpu.memory_space<vmem>>, vector<1x8x16x12xbf16>
    %12 = vector.shape_cast %11 : vector<1x8x16x12xbf16> to vector<8x16x12xbf16>
    %13 = vector.shape_cast %12 : vector<8x16x12xbf16> to vector<128x12xbf16>
    %c1 = arith.constant 1 : index
    %c0_8 = arith.constant 0 : index
    %c0_9 = arith.constant 0 : index
    %14 = vector.load %arg4[%c1, %c0_8, %c0_9] : memref<3x12x8xbf16, #tpu.memory_space<vmem>>, vector<1x12x8xbf16>
    %15 = vector.shape_cast %14 : vector<1x12x8xbf16> to vector<12x8xbf16>
    %cst_10 = arith.constant dense<0.000000e+00> : vector<128x8xf32>
    %16 = tpu.matmul %13, %15, %cst_10 {dimension_numbers = #tpu.dot_dimension_numbers<[1], [0], [0], [1], [0, 0, 1, 1], [], []>} : vector<128x12xbf16>, vector<12x8xbf16>, vector<128x8xf32> -> vector<128x8xf32>
    %17 = arith.addf %8, %16 : vector<128x8xf32>
    %c2_i32 = arith.constant 2 : i32
    %18 = arith.addi %0, %c2_i32 : i32
    %c0_11 = arith.constant 0 : index
    %19 = arith.index_cast %18 : i32 to index
    %c0_12 = arith.constant 0 : index
    %c0_13 = arith.constant 0 : index
    %20 = vector.load %arg3[%c0_11, %19, %c0_12, %c0_13] : memref<1x18x16x12xbf16, #tpu.memory_space<vmem>>, vector<1x8x16x12xbf16>
    %21 = vector.shape_cast %20 : vector<1x8x16x12xbf16> to vector<8x16x12xbf16>
    %22 = vector.shape_cast %21 : vector<8x16x12xbf16> to vector<128x12xbf16>
    %c2 = arith.constant 2 : index
    %c0_14 = arith.constant 0 : index
    %c0_15 = arith.constant 0 : index
    %23 = vector.load %arg4[%c2, %c0_14, %c0_15] : memref<3x12x8xbf16, #tpu.memory_space<vmem>>, vector<1x12x8xbf16>
    %24 = vector.shape_cast %23 : vector<1x12x8xbf16> to vector<12x8xbf16>
    %cst_16 = arith.constant dense<0.000000e+00> : vector<128x8xf32>
    %25 = tpu.matmul %22, %24, %cst_16 {dimension_numbers = #tpu.dot_dimension_numbers<[1], [0], [0], [1], [0, 0, 1, 1], [], []>} : vector<128x12xbf16>, vector<12x8xbf16>, vector<128x8xf32> -> vector<128x8xf32>
    %26 = arith.addf %17, %25 : vector<128x8xf32>
    %c0_17 = arith.constant 0 : index
    %c0_18 = arith.constant 0 : index
    %27 = vector.load %arg5[%c0_17, %c0_18] : memref<1x8xf32, #tpu.memory_space<vmem>>, vector<1x8xf32>
    %28 = vector.broadcast %27 : vector<1x8xf32> to vector<128x8xf32>
    %29 = arith.addf %26, %28 : vector<128x8xf32>
    %cst_19 = arith.constant 0.000000e+00 : f32
    %30 = vector.broadcast %cst_19 : f32 to vector<128x8xf32>
    %31 = arith.maximumf %29, %30 : vector<128x8xf32>
    %32 = vector.shape_cast %31 : vector<128x8xf32> to vector<1x8x16x8xf32>
    %33 = arith.truncf %32 : vector<1x8x16x8xf32> to vector<1x8x16x8xbf16>
    %c0_20 = arith.constant 0 : index
    %c0_21 = arith.constant 0 : index
    %c0_22 = arith.constant 0 : index
    %c0_23 = arith.constant 0 : index
    %34 = vector.load %arg6[%c0_20, %c0_21, %c0_22, %c0_23] : memref<1x8x16x8xbf16, #tpu.memory_space<vmem>>, vector<1x8x16x8xbf16>
    tpu.vector_store %arg6[%c0_20, %c0_21, %c0_22, %c0_23], %33 {strides = array<i32>} : memref<1x8x16x8xbf16, #tpu.memory_space<vmem>>, vector<1x8x16x8xbf16>,
    return
  }
  func.func @transform_0(%arg0: i32, %arg1: i32, %arg2: i32) -> (i32, i32, i32, i32) {
    %c0_i32 = arith.constant 0 : i32
    %c0_i32_0 = arith.constant 0 : i32
    %c0_i32_1 = arith.constant 0 : i32
    %c0_i32_2 = arith.constant 0 : i32
    return %arg0, %c0_i32, %c0_i32_0, %c0_i32_1 : i32, i32, i32, i32
  }
  func.func @transform_1(%arg0: i32, %arg1: i32, %arg2: i32) -> (i32, i32, i32) {
    %c0_i32 = arith.constant 0 : i32
    %c0_i32_0 = arith.constant 0 : i32
    %c0_i32_1 = arith.constant 0 : i32
    return %c0_i32, %c0_i32_0, %arg1 : i32, i32, i32
  }
  func.func @transform_2(%arg0: i32, %arg1: i32, %arg2: i32) -> (i32, i32) {
    %c0_i32 = arith.constant 0 : i32
    %c0_i32_0 = arith.constant 0 : i32
    return %c0_i32, %arg1 : i32, i32
  }
  func.func @transform_3(%arg0: i32, %arg1: i32, %arg2: i32) -> (i32, i32, i32, i32) {
    %c0_i32 = arith.constant 0 : i32
    %c0_i32_0 = arith.constant 0 : i32
    return %arg0, %arg2, %c0_i32, %arg1 : i32, i32, i32, i32
  }
}

module attributes {stable_mosaic.version = 11 : i64} {
  func.func @_conv_bias_relu_kernel(%arg0: i32, %arg1: i32, %arg2: i32, %arg3: memref<1x18x16x24xbf16, #tpu.memory_space<vmem>>, %arg4: memref<3x24x8xbf16, #tpu.memory_space<vmem>>, %arg5: memref<1x8xf32, #tpu.memory_space<vmem>>, %arg6: memref<1x8x16x8xbf16, #tpu.memory_space<vmem>>) attributes {dimension_semantics = [#tpu.dimension_semantics<parallel>, #tpu.dimension_semantics<parallel>, #tpu.dimension_semantics<parallel>], iteration_bounds = array<i64: 2, 1, 2>, scalar_prefetch = 0 : i64, scratch_operands = 0 : i64, tpu.core_type = #tpu.core_type<tc>, window_params = [{transform_indices = @transform_0, window_bounds = array<i64: 1, 18, 16, 24>}, {transform_indices = @transform_1, window_bounds = array<i64: 3, 24, 8>}, {transform_indices = @transform_2, window_bounds = array<i64: 1, 8>}, {transform_indices = @transform_3, window_bounds = array<i64: 1, 8, 16, 8>}]} {
    %c8_i32 = arith.constant 8 : i32
    %0 = arith.muli %arg2, %c8_i32 : i32
    %c0_i32 = arith.constant 0 : i32
    %1 = arith.addi %0, %c0_i32 : i32
    %c0 = arith.constant 0 : index
    %2 = arith.index_cast %1 : i32 to index
    %c0_0 = arith.constant 0 : index
    %c0_1 = arith.constant 0 : index
    %3 = vector.load %arg3[%c0, %2, %c0_0, %c0_1] : memref<1x18x16x24xbf16, #tpu.memory_space<vmem>>, vector<1x8x16x24xbf16>
    %4 = vector.shape_cast %3 : vector<1x8x16x24xbf16> to vector<8x16x24xbf16>
    %5 = vector.shape_cast %4 : vector<8x16x24xbf16> to vector<128x24xbf16>
    %c0_2 = arith.constant 0 : index
    %c0_3 = arith.constant 0 : index
    %c0_4 = arith.constant 0 : index
    %6 = vector.load %arg4[%c0_2, %c0_3, %c0_4] : memref<3x24x8xbf16, #tpu.memory_space<vmem>>, vector<1x24x8xbf16>
    %7 = vector.shape_cast %6 : vector<1x24x8xbf16> to vector<24x8xbf16>
    %cst = arith.constant dense<0.000000e+00> : vector<128x8xf32>
    %8 = tpu.matmul %5, %7, %cst {dimension_numbers = #tpu.dot_dimension_numbers<[1], [0], [0], [1], [0, 0, 1, 1], [], []>} : vector<128x24xbf16>, vector<24x8xbf16>, vector<128x8xf32> -> vector<128x8xf32>
    %c1_i32 = arith.constant 1 : i32
    %9 = arith.addi %0, %c1_i32 : i32
    %c0_5 = arith.constant 0 : index
    %10 = arith.index_cast %9 : i32 to index
    %c0_6 = arith.constant 0 : index
    %c0_7 = arith.constant 0 : index
    %11 = vector.load %arg3[%c0_5, %10, %c0_6, %c0_7] : memref<1x18x16x24xbf16, #tpu.memory_space<vmem>>, vector<1x8x16x24xbf16>
    %12 = vector.shape_cast %11 : vector<1x8x16x24xbf16> to vector<8x16x24xbf16>
    %13 = vector.shape_cast %12 : vector<8x16x24xbf16> to vector<128x24xbf16>
    %c1 = arith.constant 1 : index
    %c0_8 = arith.constant 0 : index
    %c0_9 = arith.constant 0 : index
    %14 = vector.load %arg4[%c1, %c0_8, %c0_9] : memref<3x24x8xbf16, #tpu.memory_space<vmem>>, vector<1x24x8xbf16>
    %15 = vector.shape_cast %14 : vector<1x24x8xbf16> to vector<24x8xbf16>
    %cst_10 = arith.constant dense<0.000000e+00> : vector<128x8xf32>
    %16 = tpu.matmul %13, %15, %cst_10 {dimension_numbers = #tpu.dot_dimension_numbers<[1], [0], [0], [1], [0, 0, 1, 1], [], []>} : vector<128x24xbf16>, vector<24x8xbf16>, vector<128x8xf32> -> vector<128x8xf32>
    %17 = arith.addf %8, %16 : vector<128x8xf32>
    %c2_i32 = arith.constant 2 : i32
    %18 = arith.addi %0, %c2_i32 : i32
    %c0_11 = arith.constant 0 : index
    %19 = arith.index_cast %18 : i32 to index
    %c0_12 = arith.constant 0 : index
    %c0_13 = arith.constant 0 : index
    %20 = vector.load %arg3[%c0_11, %19, %c0_12, %c0_13] : memref<1x18x16x24xbf16, #tpu.memory_space<vmem>>, vector<1x8x16x24xbf16>
    %21 = vector.shape_cast %20 : vector<1x8x16x24xbf16> to vector<8x16x24xbf16>
    %22 = vector.shape_cast %21 : vector<8x16x24xbf16> to vector<128x24xbf16>
    %c2 = arith.constant 2 : index
    %c0_14 = arith.constant 0 : index
    %c0_15 = arith.constant 0 : index
    %23 = vector.load %arg4[%c2, %c0_14, %c0_15] : memref<3x24x8xbf16, #tpu.memory_space<vmem>>, vector<1x24x8xbf16>
    %24 = vector.shape_cast %23 : vector<1x24x8xbf16> to vector<24x8xbf16>
    %cst_16 = arith.constant dense<0.000000e+00> : vector<128x8xf32>
    %25 = tpu.matmul %22, %24, %cst_16 {dimension_numbers = #tpu.dot_dimension_numbers<[1], [0], [0], [1], [0, 0, 1, 1], [], []>} : vector<128x24xbf16>, vector<24x8xbf16>, vector<128x8xf32> -> vector<128x8xf32>
    %26 = arith.addf %17, %25 : vector<128x8xf32>
    %c0_17 = arith.constant 0 : index
    %c0_18 = arith.constant 0 : index
    %27 = vector.load %arg5[%c0_17, %c0_18] : memref<1x8xf32, #tpu.memory_space<vmem>>, vector<1x8xf32>
    %28 = vector.broadcast %27 : vector<1x8xf32> to vector<128x8xf32>
    %29 = arith.addf %26, %28 : vector<128x8xf32>
    %cst_19 = arith.constant 0.000000e+00 : f32
    %30 = vector.broadcast %cst_19 : f32 to vector<128x8xf32>
    %31 = arith.maximumf %29, %30 : vector<128x8xf32>
    %32 = vector.shape_cast %31 : vector<128x8xf32> to vector<1x8x16x8xf32>
    %33 = arith.truncf %32 : vector<1x8x16x8xf32> to vector<1x8x16x8xbf16>
    %c0_20 = arith.constant 0 : index
    %c0_21 = arith.constant 0 : index
    %c0_22 = arith.constant 0 : index
    %c0_23 = arith.constant 0 : index
    %34 = vector.load %arg6[%c0_20, %c0_21, %c0_22, %c0_23] : memref<1x8x16x8xbf16, #tpu.memory_space<vmem>>, vector<1x8x16x8xbf16>
    tpu.vector_store %arg6[%c0_20, %c0_21, %c0_22, %c0_23], %33 {strides = array<i32>} : memref<1x8x16x8xbf16, #tpu.memory_space<vmem>>, vector<1x8x16x8xbf16>,
    return
  }
  func.func @transform_0(%arg0: i32, %arg1: i32, %arg2: i32) -> (i32, i32, i32, i32) {
    %c0_i32 = arith.constant 0 : i32
    %c0_i32_0 = arith.constant 0 : i32
    %c0_i32_1 = arith.constant 0 : i32
    %c0_i32_2 = arith.constant 0 : i32
    return %arg0, %c0_i32, %c0_i32_0, %c0_i32_1 : i32, i32, i32, i32
  }
  func.func @transform_1(%arg0: i32, %arg1: i32, %arg2: i32) -> (i32, i32, i32) {
    %c0_i32 = arith.constant 0 : i32
    %c0_i32_0 = arith.constant 0 : i32
    %c0_i32_1 = arith.constant 0 : i32
    return %c0_i32, %c0_i32_0, %arg1 : i32, i32, i32
  }
  func.func @transform_2(%arg0: i32, %arg1: i32, %arg2: i32) -> (i32, i32) {
    %c0_i32 = arith.constant 0 : i32
    %c0_i32_0 = arith.constant 0 : i32
    return %c0_i32, %arg1 : i32, i32
  }
  func.func @transform_3(%arg0: i32, %arg1: i32, %arg2: i32) -> (i32, i32, i32, i32) {
    %c0_i32 = arith.constant 0 : i32
    %c0_i32_0 = arith.constant 0 : i32
    return %arg0, %arg2, %c0_i32, %arg1 : i32, i32, i32, i32
  }
}

module attributes {stable_mosaic.version = 11 : i64} {
  func.func @_maxpool_kernel(%arg0: i32, %arg1: i32, %arg2: memref<1x18x9x16xbf16, #tpu.memory_space<vmem>>, %arg3: memref<1x8x8x8xf32, #tpu.memory_space<vmem>>) attributes {dimension_semantics = [#tpu.dimension_semantics<parallel>, #tpu.dimension_semantics<parallel>], iteration_bounds = array<i64: 2, 1>, scalar_prefetch = 0 : i64, scratch_operands = 0 : i64, tpu.core_type = #tpu.core_type<tc>, window_params = [{transform_indices = @transform_0, window_bounds = array<i64: 1, 18, 9, 16>}, {transform_indices = @transform_1, window_bounds = array<i64: 1, 8, 8, 8>}]} {
    %c16_i32 = arith.constant 16 : i32
    %0 = arith.muli %arg1, %c16_i32 : i32
    %c0 = arith.constant 0 : index
    %1 = arith.index_cast %0 : i32 to index
    %c0_0 = arith.constant 0 : index
    %c0_1 = arith.constant 0 : index
    %2 = vector.load %arg2[%c0, %1, %c0_0, %c0_1] : memref<1x18x9x16xbf16, #tpu.memory_space<vmem>>, vector<1x18x9x16xbf16>
    %3 = vector.shape_cast %2 : vector<1x18x9x16xbf16> to vector<18x9x16xbf16>
    %4 = vector.extract_strided_slice %3 {offsets = [0, 0, 0], sizes = [18, 8, 8], strides = [1, 1, 1]} : vector<18x9x16xbf16> to vector<18x8x8xbf16>
    %5 = vector.extract_strided_slice %3 {offsets = [0, 0, 8], sizes = [18, 8, 8], strides = [1, 1, 1]} : vector<18x9x16xbf16> to vector<18x8x8xbf16>
    %6 = arith.maximumf %4, %5 : vector<18x8x8xbf16>
    %7 = vector.extract_strided_slice %3 {offsets = [0, 1, 0], sizes = [18, 8, 8], strides = [1, 1, 1]} : vector<18x9x16xbf16> to vector<18x8x8xbf16>
    %8 = arith.maximumf %6, %7 : vector<18x8x8xbf16>
    %9 = vector.extract_strided_slice %8 {offsets = [0, 0, 0], sizes = [16, 8, 8], strides = [1, 1, 1]} : vector<18x8x8xbf16> to vector<16x8x8xbf16>
    %10 = vector.extract_strided_slice %8 {offsets = [1, 0, 0], sizes = [16, 8, 8], strides = [1, 1, 1]} : vector<18x8x8xbf16> to vector<16x8x8xbf16>
    %11 = arith.maximumf %9, %10 : vector<16x8x8xbf16>
    %12 = vector.extract_strided_slice %8 {offsets = [2, 0, 0], sizes = [16, 8, 8], strides = [1, 1, 1]} : vector<18x8x8xbf16> to vector<16x8x8xbf16>
    %13 = arith.maximumf %11, %12 : vector<16x8x8xbf16>
    %14 = vector.shape_cast %13 : vector<16x8x8xbf16> to vector<8x2x8x8xbf16>
    %15 = vector.extract_strided_slice %14 {offsets = [0, 0, 0, 0], sizes = [8, 1, 8, 8], strides = [1, 1, 1, 1]} : vector<8x2x8x8xbf16> to vector<8x1x8x8xbf16>
    %16 = vector.shape_cast %15 : vector<8x1x8x8xbf16> to vector<8x8x8xbf16>
    %17 = vector.shape_cast %16 : vector<8x8x8xbf16> to vector<1x8x8x8xbf16>
    %18 = arith.extf %17 : vector<1x8x8x8xbf16> to vector<1x8x8x8xf32>
    %c0_2 = arith.constant 0 : index
    %c0_3 = arith.constant 0 : index
    %c0_4 = arith.constant 0 : index
    %c0_5 = arith.constant 0 : index
    %19 = vector.load %arg3[%c0_2, %c0_3, %c0_4, %c0_5] : memref<1x8x8x8xf32, #tpu.memory_space<vmem>>, vector<1x8x8x8xf32>
    tpu.vector_store %arg3[%c0_2, %c0_3, %c0_4, %c0_5], %18 {strides = array<i32>} : memref<1x8x8x8xf32, #tpu.memory_space<vmem>>, vector<1x8x8x8xf32>,
    return
  }
  func.func @transform_0(%arg0: i32, %arg1: i32) -> (i32, i32, i32, i32) {
    %c0_i32 = arith.constant 0 : i32
    %c0_i32_0 = arith.constant 0 : i32
    %c0_i32_1 = arith.constant 0 : i32
    %c0_i32_2 = arith.constant 0 : i32
    return %arg0, %c0_i32, %c0_i32_0, %c0_i32_1 : i32, i32, i32, i32
  }
  func.func @transform_1(%arg0: i32, %arg1: i32) -> (i32, i32, i32, i32) {
    %c0_i32 = arith.constant 0 : i32
    %c0_i32_0 = arith.constant 0 : i32
    %c0_i32_1 = arith.constant 0 : i32
    return %arg0, %arg1, %c0_i32, %c0_i32_0 : i32, i32, i32, i32
  }
}

</mosaic_0001>

<llo_original>
// kernel: conv_block_forward.3
$region0: #{conv_block_forward.3}
  #allocation0 [shape = 'u32[]', space=smem, size = 0x4, offset = 0x4, fixed_abs, tag = 'smem constant byte address 0x4 - core index']
  #allocation1 [shape = 'u32[144,128]{1,0:T(1,128)}', space=vmem, size = 0x12000, scoped, tag = 'internal scratch']
  %s0 = inlined_call_operand.vmem [shape: bf16[2,18,16,12], index: 0, kind: input, shape index: {}]
  %s1 = inlined_call_operand.vmem [shape: bf16[3,12,8], index: 1, kind: input, shape index: {}]
  %s2 = inlined_call_operand.vmem [shape: f32[1,8], index: 2, kind: input, shape index: {}]
  %s3 = inlined_call_operand.vmem [shape: bf16[2,16,16,8], index: 3, kind: output, shape index: {}]
  %s4 = sld [smem:[#allocation0]]
  $region45: #{conv_block_forward.3} parent=0
    _
  %s6 = ssub.s32 1, %s4
  %s7 = scalar_select 0, %s6, %s4
  loop: start=0, step=1, limit=6
  $region2: #{conv_block_forward.3} parent=0 // loop_pre_header
    _
  $region3: #{conv_block_forward.3} parent=0 // loop_header
    %s9 = sphi 0, %s13
    %p10 = scmp.ge.s32.totalorder %s9, 6
    %s16 = sphi 0, %s35
    %s17 = sphi 0, %s31
    %s18 = sphi 0, %s27
    %s19 = sphi 0, %s16
    %s20 = sphi 0, %s17
    %s21 = sphi 0, %s18
    %s22 = sphi 0, %s19
    %s23 = sphi 0, %s20
    %s24 = sphi 0, %s21
    %s38 = sphi 0, %s40
    %s41 = sphi 0, %s38
    %s42 = sphi 0, %s41
    %s58 = sphi 0, %s42
    %s64 = sphi 0, %s66
    %s67 = sphi 0, %s64
    %s68 = sphi 0, %s67
    %s84 = sphi 0, %s68
    %s90 = sphi 0, %s92
    %s93 = sphi 0, %s90
    %s94 = sphi 0, %s93
    %s110 = sphi 0, %s94
    %s120 = sphi 0, %s122
    %s123 = sphi 0, %s120
    %s124 = sphi 0, %s123
    %s140 = sphi 0, %s124
  $region4: #{conv_block_forward.3} parent=0 // loop_header_branch
    %12 = sbr.rel (%p10) target = $region8
  $region5: #{conv_block_forward.3} parent=0 // loop_body
    %s14 = ssub.s32 %s9, 1
    %s15 = ssub.s32 %s9, 2
    %s25 = sadd.s32 1, %s18
    %p26 = scmp.ge.s32.totalorder %s25, 2
    %s27 = scalar_select %p26, 0, %s25
    %s28 = sadd.s32 1, %s17
    %s29 = scalar_select %p26, %s28, %s17
    %p30 = scmp.ge.s32.totalorder %s29, 1
    %s31 = scalar_select %p30, 0, %s29
    %s32 = sadd.s32 1, %s16
    %s33 = scalar_select %p30, %s32, %s16
    %p34 = scmp.ge.s32.totalorder %s33, 2
    %s35 = scalar_select %p34, 0, %s33
    %s36 = ssub.s32 %s16, %s35
    %p37 = scmp.eq.s32.totalorder %s36, 0
    %s39 = sadd.s32 %s38, 1
    %s40 = scalar_select %p37, %s38, %s39
    %p43 = pneg %p37
    %p44 = scmp.eq.s32.totalorder %s9, 3
    %p45 = por %p43, %p44
    %p46 = scmp.ne.s32.totalorder %s38, %s41
    %p47 = scmp.eq.s32.totalorder %s9, 0
    %p48 = por %p46, %p47
    %p49 = scmp.ne.s32.totalorder %s38, %s41
    %p50 = scmp.eq.s32.totalorder %s14, 3
    %p51 = por %p49, %p50
    %p52 = scmp.ne.s32.totalorder %s41, %s42
    %p53 = scmp.eq.s32.totalorder %s14, 0
    %p54 = por %p52, %p53
    %p55 = scmp.ne.s32.totalorder %s41, %s42
    %p56 = scmp.eq.s32.totalorder %s15, 3
    %p57 = por %p55, %p56
    %p59 = scmp.ne.s32.totalorder %s42, %s58
    %p60 = scmp.eq.s32.totalorder %s15, 0
    %p61 = por %p59, %p60
    %s62 = ssub.s32 %s17, %s31
    %p63 = scmp.eq.s32.totalorder %s62, 0
    %s65 = sadd.s32 %s64, 1
    %s66 = scalar_select %p63, %s64, %s65
    %p69 = pneg %p63
    %p70 = scmp.eq.s32.totalorder %s9, 3
    %p71 = por %p69, %p70
    %p72 = scmp.ne.s32.totalorder %s64, %s67
    %p73 = scmp.eq.s32.totalorder %s9, 0
    %p74 = por %p72, %p73
    %p75 = scmp.ne.s32.totalorder %s64, %s67
    %p76 = scmp.eq.s32.totalorder %s14, 3
    %p77 = por %p75, %p76
    %p78 = scmp.ne.s32.totalorder %s67, %s68
    %p79 = scmp.eq.s32.totalorder %s14, 0
    %p80 = por %p78, %p79
    %p81 = scmp.ne.s32.totalorder %s67, %s68
    %p82 = scmp.eq.s32.totalorder %s15, 3
    %p83 = por %p81, %p82
    %p85 = scmp.ne.s32.totalorder %s68, %s84
    %p86 = scmp.eq.s32.totalorder %s15, 0
    %p87 = por %p85, %p86
    %s88 = ssub.s32 %s17, %s31
    %p89 = scmp.eq.s32.totalorder %s88, 0
    %s91 = sadd.s32 %s90, 1
    %s92 = scalar_select %p89, %s90, %s91
    %p95 = pneg %p89
    %p96 = scmp.eq.s32.totalorder %s9, 3
    %p97 = por %p95, %p96
    %p98 = scmp.ne.s32.totalorder %s90, %s93
    %p99 = scmp.eq.s32.totalorder %s9, 0
    %p100 = por %p98, %p99
    %p101 = scmp.ne.s32.totalorder %s90, %s93
    %p102 = scmp.eq.s32.totalorder %s14, 3
    %p103 = por %p101, %p102
    %p104 = scmp.ne.s32.totalorder %s93, %s94
    %p105 = scmp.eq.s32.totalorder %s14, 0
    %p106 = por %p104, %p105
    %p107 = scmp.ne.s32.totalorder %s93, %s94
    %p108 = scmp.eq.s32.totalorder %s15, 3
    %p109 = por %p107, %p108
    %p111 = scmp.ne.s32.totalorder %s94, %s110
    %p112 = scmp.eq.s32.totalorder %s15, 0
    %p113 = por %p111, %p112
    %s114 = ssub.s32 %s16, %s35
    %s115 = ssub.s32 %s18, %s27
    %s116 = sor.u32 %s114, %s115
    %s117 = ssub.s32 %s17, %s31
    %s118 = sor.u32 %s116, %s117
    %p119 = scmp.eq.s32.totalorder %s118, 0
    %s121 = sadd.s32 %s120, 1
    %s122 = scalar_select %p119, %s120, %s121
    %p125 = pneg %p119
    %p126 = scmp.eq.s32.totalorder %s9, 3
    %p127 = por %p125, %p126
    %p128 = scmp.ne.s32.totalorder %s120, %s123
    %p129 = scmp.eq.s32.totalorder %s9, 0
    %p130 = por %p128, %p129
    %p131 = scmp.ne.s32.totalorder %s120, %s123
    %p132 = scmp.eq.s32.totalorder %s14, 3
    %p133 = por %p131, %p132
    %p134 = scmp.ne.s32.totalorder %s123, %s124
    %p135 = scmp.eq.s32.totalorder %s14, 0
    %p136 = por %p134, %p135
    %p137 = scmp.ne.s32.totalorder %s123, %s124
    %p138 = scmp.eq.s32.totalorder %s15, 3
    %p139 = por %p137, %p138
    %p141 = scmp.ne.s32.totalorder %s124, %s140
    %p142 = scmp.eq.s32.totalorder %s15, 0
    %p143 = por %p141, %p142
    %p144 = scmp.le.s32.totalorder 1, %s9
    %p145 = scmp.lt.s32.totalorder %s9, 5
    %p146 = pnand %p144, %p145
    %p147 = pneg %p146
    // Predicated region
    $region9: #{conv_block_forward.3} parent=5 // pred_check
      _
    $region10: #{conv_block_forward.3} parent=5 // pred_check_branch
      %149 = sbr.rel (%p146) target = $region12
    $region11: #{conv_block_forward.3} parent=5 // pred_region
      %s150 = ssub.s32 %s9, 1
      // Predicated region
      $region13: #{conv_block_forward.3} parent=11 // pred_check
        %p151 = pneg %p80
      $region14: #{conv_block_forward.3} parent=11 // pred_check_branch
        %153 = sbr.rel (%p151) target = $region16
      $region15: #{conv_block_forward.3} parent=11 // pred_region
        %p154 = scmp.lt.s32.totalorder %s20, 0
        %s155 = scalar_select %p154, %s20, 0
        %s156 = smul.addr %s155, 4
        %s157 = scalar_lea.vmem %s1, %s156
      $region16: #{conv_block_forward.3} parent=11 // pred_fallthru
        _
      // Predicated region
      $region17: #{conv_block_forward.3} parent=11 // pred_check
        %p158 = pneg %p106
      $region18: #{conv_block_forward.3} parent=11 // pred_check_branch
        %160 = sbr.rel (%p158) target = $region20
      $region19: #{conv_block_forward.3} parent=11 // pred_region
        %p161 = scmp.lt.s32.totalorder %s20, 0
        %s162 = scalar_select %p161, %s20, 0
        %s163 = scalar_lea.vmem %s2, %s162
      $region20: #{conv_block_forward.3} parent=11 // pred_fallthru
        _
    $region12: #{conv_block_forward.3} parent=5 // pred_fallthru
      _
    %p164 = scmp.lt.s32.totalorder %s9, 4
    // Predicated region
    $region21: #{conv_block_forward.3} parent=5 // pred_check
      %p165 = pneg %p164
    $region22: #{conv_block_forward.3} parent=5 // pred_check_branch
      %167 = sbr.rel (%p165) target = $region24
    $region23: #{conv_block_forward.3} parent=5 // pred_region
      // Predicated region
      $region25: #{conv_block_forward.3} parent=23 // pred_check
        %p168 = pneg %p48
      $region26: #{conv_block_forward.3} parent=23 // pred_check_branch
        %170 = sbr.rel (%p168) target = $region28
      $region27: #{conv_block_forward.3} parent=23 // pred_region
        %p171 = scmp.lt.s32.totalorder %s16, 1
        %s172 = scalar_select %p171, %s16, 1
        %s173 = smul.addr %s172, 36
        %s174 = smul.addr %s173, 4
        %s175 = scalar_lea.vmem %s0, %s174
      $region28: #{conv_block_forward.3} parent=23 // pred_fallthru
        _
    $region24: #{conv_block_forward.3} parent=5 // pred_fallthru
      _
    %p176 = scmp.le.s32.totalorder 1, %s9
    %p177 = scmp.lt.s32.totalorder %s9, 5
    %p178 = pnand %p176, %p177
    %p179 = pneg %p178
    // Predicated region
    $region29: #{conv_block_forward.3} parent=5 // pred_check
      _
    $region30: #{conv_block_forward.3} parent=5 // pred_check_branch
      %181 = sbr.rel (%p178) target = $region32
    $region31: #{conv_block_forward.3} parent=5 // pred_region
      %s182 = ssub.s32 %s9, 1
      %p183 = scmp.lt.s32.totalorder %s19, 1
      %s184 = scalar_select %p183, %s19, 1
      %s185 = smul.addr %s184, 36
      %s186 = smul.addr %s185, 4
      %s187 = scalar_lea.vmem %s0, %s186
      %p188 = pneg %p54
      %p189 = pneg %p51
      %p190 = scmp.lt.s32.totalorder %s20, 0
      %s191 = scalar_select %p190, %s20, 0
      %s192 = smul.addr %s191, 4
      %s193 = scalar_lea.vmem %s1, %s192
      %p194 = pneg %p80
      %p195 = pneg %p77
      %p196 = scmp.lt.s32.totalorder %s20, 0
      %s197 = scalar_select %p196, %s20, 0
      %s198 = scalar_lea.vmem %s2, %s197
      %p199 = pneg %p106
      %p200 = pneg %p103
      %p201 = pneg %p136
      %p202 = pneg %p133
      %s203 = smul.u32 8, %s21
      %p204 = scmp.lt.s32.totalorder %s19, 1
      %s205 = scalar_select %p204, %s19, 1
      %p206 = scmp.lt.s32.totalorder %s203, 15
      %s207 = scalar_select %p206, %s203, 15
      %p208 = scmp.lt.s32.totalorder %s20, 0
      %s209 = scalar_select %p208, %s20, 0
      %s210 = smul.addr %s207, 2
      %s211 = sadd.s32 %s209, %s210
      %s212 = smul.addr %s205, 32
      %s213 = sadd.s32 %s211, %s212
      %s214 = smul.addr %s213, 4
      %s215 = scalar_lea.vmem %s3, %s214
      %p216 = scmp.lt.s32.totalorder %s19, 1
      %s217 = scalar_select %p216, %s19, 1
      %s218 = smul.addr %s217, 36
      %s219 = smul.addr %s218, 4
      %s220 = scalar_lea.vmem %s0, %s219
      %p221 = scmp.lt.s32.totalorder %s20, 0
      %s222 = scalar_select %p221, %s20, 0
      %s223 = smul.addr %s222, 4
      %s224 = scalar_lea.vmem %s1, %s223
      %p225 = scmp.lt.s32.totalorder %s20, 0
      %s226 = scalar_select %p225, %s20, 0
      %s227 = scalar_lea.vmem %s2, %s226
      %s228 = smul.u32 8, %s21
      %p229 = scmp.lt.s32.totalorder %s19, 1
      %s230 = scalar_select %p229, %s19, 1
      %p231 = scmp.lt.s32.totalorder %s228, 15
      %s232 = scalar_select %p231, %s228, 15
      %p233 = scmp.lt.s32.totalorder %s20, 0
      %s234 = scalar_select %p233, %s20, 0
      %s235 = smul.addr %s232, 2
      %s236 = sadd.s32 %s234, %s235
      %s237 = smul.addr %s230, 32
      %s238 = sadd.s32 %s236, %s237
      %s239 = smul.addr %s238, 4
      %s240 = scalar_lea.vmem %s3, %s239
      %s241 = smul.u32 8, %s21
      %s243 = smul.u32 %s21, 8
      %s244 = smul.u32 %s243, 2
      %s245 = smul.addr %s244, 4
      %s246 = scalar_lea.vmem %s220, %s245
      %v247 = vld [vmem:[%s246] sm:$0xf]
      %v248 = vld [vmem:[%s246 + $0x4] sm:$0xf]
      %v249 = vld [vmem:[%s246 + $0x8] sm:$0xf]
      %v250 = vld [vmem:[%s246 + $0xc] sm:$0xf]
      %v251 = vld [vmem:[%s246 + $0x10] sm:$0xf]
      %v252 = vld [vmem:[%s246 + $0x14] sm:$0xf]
      %v253 = vld [vmem:[%s246 + $0x18] sm:$0xf]
      %v254 = vld [vmem:[%s246 + $0x1c] sm:$0xf]
      %v255 = vld [vmem:[%s246 + $0x20] sm:$0xf]
      %v256 = vld [vmem:[%s246 + $0x24] sm:$0xf]
      %v257 = vld [vmem:[%s246 + $0x28] sm:$0xf]
      %v258 = vld [vmem:[%s246 + $0x2c] sm:$0xf]
      %v259 = vld [vmem:[%s246 + $0x30] sm:$0xf]
      %v260 = vld [vmem:[%s246 + $0x34] sm:$0xf]
      %v261 = vld [vmem:[%s246 + $0x38] sm:$0xf]
      %v262 = vld [vmem:[%s246 + $0x3c] sm:$0xf]
      %v263 = vld [vmem:[%s224] sm:$0xf]
      %v264 = vld [vmem:[%s224 + $0x4] sm:$0x3]
      %s265 = sadd.s32 %s243, 1
      %s266 = smul.u32 %s265, 2
      %s267 = smul.addr %s266, 4
      %s268 = scalar_lea.vmem %s220, %s267
      %v269 = vld [vmem:[%s268] sm:$0xf]
      %v270 = vld [vmem:[%s268 + $0x4] sm:$0xf]
      %v271 = vld [vmem:[%s268 + $0x8] sm:$0xf]
      %v272 = vld [vmem:[%s268 + $0xc] sm:$0xf]
      %v273 = vld [vmem:[%s268 + $0x10] sm:$0xf]
      %v274 = vld [vmem:[%s268 + $0x14] sm:$0xf]
      %v275 = vld [vmem:[%s268 + $0x18] sm:$0xf]
      %v276 = vld [vmem:[%s268 + $0x1c] sm:$0xf]
      %v277 = vld [vmem:[%s268 + $0x20] sm:$0xf]
      %v278 = vld [vmem:[%s268 + $0x24] sm:$0xf]
      %v279 = vld [vmem:[%s268 + $0x28] sm:$0xf]
      %v280 = vld [vmem:[%s268 + $0x2c] sm:$0xf]
      %v281 = vld [vmem:[%s268 + $0x30] sm:$0xf]
      %v282 = vld [vmem:[%s268 + $0x34] sm:$0xf]
      %v283 = vld [vmem:[%s268 + $0x38] sm:$0xf]
      %v284 = vld [vmem:[%s268 + $0x3c] sm:$0xf]
      %s285 = scalar_lea.vmem %s224, 8
      %v286 = vld [vmem:[%s285] sm:$0xf]
      %v287 = vld [vmem:[%s285 + $0x4] sm:$0x3]
      %v304 = vunpack.c.l.b16 %v269
      %v305 = vunpack.c.l.b16 %v270
      %v306 = vunpack.c.l.b16 %v271
      %v307 = vunpack.c.l.b16 %v272
      %v308 = vunpack.c.l.b16 %v273
      %v309 = vunpack.c.l.b16 %v274
      %v310 = vunpack.c.l.b16 %v275
      %v311 = vunpack.c.l.b16 %v276
      %v312 = vunpack.c.l.b16 %v277
      %v313 = vunpack.c.l.b16 %v278
      %v314 = vunpack.c.l.b16 %v279
      %v315 = vunpack.c.l.b16 %v280
      %v316 = vunpack.c.l.b16 %v281
      %v317 = vunpack.c.l.b16 %v282
      %v318 = vunpack.c.l.b16 %v283
      %v319 = vunpack.c.l.b16 %v284
      %v320 = vpack.c.b16 %v305, %v304
      %v321 = vpack.c.b16 %v307, %v306
      %v322 = vpack.c.b16 %v309, %v308
      %v323 = vpack.c.b16 %v311, %v310
      %v324 = vpack.c.b16 %v313, %v312
      %v325 = vpack.c.b16 %v315, %v314
      %v326 = vpack.c.b16 %v317, %v316
      %v327 = vpack.c.b16 %v319, %v318
      %v330 = vunpack.c.l.b16 %v286
      %v331 = vunpack.c.l.b16 %v287
      %v332 = vpack.c.b16 %v331, %v330
      %vm333 = vcmask 97280
      %v335 = vsel %vm333, %v320, 0
      %v338 = vsel %vm333, %v321, 0
      %v341 = vsel %vm333, %v322, 0
      %v344 = vsel %vm333, %v323, 0
      %v347 = vsel %vm333, %v324, 0
      %v350 = vsel %vm333, %v325, 0
      %v353 = vsel %vm333, %v326, 0
      %v356 = vsel %vm333, %v327, 0
      %vm358 = vcmask 1045504
      %v360 = vsel %vm358, %v332, 0
      %362 = vmatprep.subr.bf16.mxu0 0
      %363 = vmatpush1.bf16.msra.mxu0 %v360
      %364 = vmatprep.subr.bf16.mxu0 0
      %365 = vmatpush1.bf16.msra.mxu0 0
      %366 = vmatprep.subr.bf16.mxu0 0
      %367 = vmatpush1.bf16.msra.mxu0 0
      %368 = vmatprep.subr.bf16.mxu0 0
      %369 = vmatpush1.bf16.msra.mxu0 0
      %370 = vmatprep.subr.bf16.mxu0 0
      %371 = vmatpush1.bf16.msra.mxu0 0
      %372 = vmatprep.subr.bf16.mxu0 0
      %373 = vmatpush1.bf16.msra.mxu0 0
      %374 = vmatprep.subr.bf16.mxu0 0
      %375 = vmatpush1.bf16.msra.mxu0 0
      %376 = vmatprep.subr.bf16.mxu0 0
      %377 = vmatpush1.bf16.msra.mxu0 0
      %378 = vmatprep.subr.bf16.mxu0 0
      %379 = vmatpush1.bf16.msra.mxu0 0
      %380 = vmatprep.subr.bf16.mxu0 0
      %381 = vmatpush1.bf16.msra.mxu0 0
      %382 = vmatprep.subr.bf16.mxu0 0
      %383 = vmatpush1.bf16.msra.mxu0 0
      %384 = vmatprep.subr.bf16.mxu0 0
      %385 = vmatpush1.bf16.msra.mxu0 0
      %386 = vmatprep.subr.bf16.mxu0 0
      %387 = vmatpush1.bf16.msra.mxu0 0
      %388 = vmatprep.subr.bf16.mxu0 0
      %389 = vmatpush1.bf16.msra.mxu0 0
      %390 = vmatprep.subr.bf16.mxu0 0
      %391 = vmatpush1.bf16.msra.mxu0 0
      %392 = vmatprep.subr.bf16.mxu0 0
      %393 = vmatpush1.bf16.msra.mxu0 0
      %394 = vmatprep.mubr.bf16.mxu0 0
      %395 = vmatmul.mubr.bf16.gmra.mrb[0].mxu0 %v335
      %v396 = vpop.f32.mrb[0].mxu0
      %v397 = vadd.f32 0.0, %v396
      %v398 = vpop.f32.mrb[0].mxu0
      %v399 = vpop.f32.mrb[0].mxu0
      %v400 = vadd.f32 0.0, %v399
      %v401 = vpop.f32.mrb[0].mxu0
      %402 = vmatprep.mubr.bf16.mxu0 0
      %403 = vmatmul.mubr.bf16.gmra.mrb[0].mxu0 %v338
      %v404 = vpop.f32.mrb[0].mxu0
      %v405 = vadd.f32 0.0, %v404
      %v406 = vpop.f32.mrb[0].mxu0
      %v407 = vpop.f32.mrb[0].mxu0
      %v408 = vadd.f32 0.0, %v407
      %v409 = vpop.f32.mrb[0].mxu0
      %410 = vmatprep.mubr.bf16.mxu0 0
      %411 = vmatmul.mubr.bf16.gmra.mrb[0].mxu0 %v341
      %v412 = vpop.f32.mrb[0].mxu0
      %v413 = vadd.f32 0.0, %v412
      %v414 = vpop.f32.mrb[0].mxu0
      %v415 = vpop.f32.mrb[0].mxu0
      %v416 = vadd.f32 0.0, %v415
      %v417 = vpop.f32.mrb[0].mxu0
      %418 = vmatprep.mubr.bf16.mxu0 0
      %419 = vmatmul.mubr.bf16.gmra.mrb[0].mxu0 %v344
      %v420 = vpop.f32.mrb[0].mxu0
      %v421 = vadd.f32 0.0, %v420
      %v422 = vpop.f32.mrb[0].mxu0
      %v423 = vpop.f32.mrb[0].mxu0
      %v424 = vadd.f32 0.0, %v423
      %v425 = vpop.f32.mrb[0].mxu0
      %426 = vmatprep.mubr.bf16.mxu0 0
      %427 = vmatmul.mubr.bf16.gmra.mrb[0].mxu0 %v347
      %v428 = vpop.f32.mrb[0].mxu0
      %v429 = vadd.f32 0.0, %v428
      %v430 = vpop.f32.mrb[0].mxu0
      %v431 = vpop.f32.mrb[0].mxu0
      %v432 = vadd.f32 0.0, %v431
      %v433 = vpop.f32.mrb[0].mxu0
      %434 = vmatprep.mubr.bf16.mxu0 0
      %435 = vmatmul.mubr.bf16.gmra.mrb[0].mxu0 %v350
      %v436 = vpop.f32.mrb[0].mxu0
      %v437 = vadd.f32 0.0, %v436
      %v438 = vpop.f32.mrb[0].mxu0
      %v439 = vpop.f32.mrb[0].mxu0
      %v440 = vadd.f32 0.0, %v439
      %v441 = vpop.f32.mrb[0].mxu0
      %442 = vmatprep.mubr.bf16.mxu0 0
      %443 = vmatmul.mubr.bf16.gmra.mrb[0].mxu0 %v353
      %v444 = vpop.f32.mrb[0].mxu0
      %v445 = vadd.f32 0.0, %v444
      %v446 = vpop.f32.mrb[0].mxu0
      %v447 = vpop.f32.mrb[0].mxu0
      %v448 = vadd.f32 0.0, %v447
      %v449 = vpop.f32.mrb[0].mxu0
      %450 = vmatprep.mubr.bf16.mxu0 0
      %451 = vmatmul.mubr.bf16.gmra.mrb[0].mxu0 %v356
      %v452 = vpop.f32.mrb[0].mxu0
      %v453 = vadd.f32 0.0, %v452
      %v454 = vpop.f32.mrb[0].mxu0
      %v455 = vpop.f32.mrb[0].mxu0
      %v456 = vadd.f32 0.0, %v455
      %v457 = vpop.f32.mrb[0].mxu0
      %458 = vdwg.mxu0
      %v475 = vunpack.c.l.b16 %v247
      %v476 = vunpack.c.l.b16 %v248
      %v477 = vunpack.c.l.b16 %v249
      %v478 = vunpack.c.l.b16 %v250
      %v479 = vunpack.c.l.b16 %v251
      %v480 = vunpack.c.l.b16 %v252
      %v481 = vunpack.c.l.b16 %v253
      %v482 = vunpack.c.l.b16 %v254
      %v483 = vunpack.c.l.b16 %v255
      %v484 = vunpack.c.l.b16 %v256
      %v485 = vunpack.c.l.b16 %v257
      %v486 = vunpack.c.l.b16 %v258
      %v487 = vunpack.c.l.b16 %v259
      %v488 = vunpack.c.l.b16 %v260
      %v489 = vunpack.c.l.b16 %v261
      %v490 = vunpack.c.l.b16 %v262
      %v491 = vpack.c.b16 %v476, %v475
      %v492 = vpack.c.b16 %v478, %v477
      %v493 = vpack.c.b16 %v480, %v479
      %v494 = vpack.c.b16 %v482, %v481
      %v495 = vpack.c.b16 %v484, %v483
      %v496 = vpack.c.b16 %v486, %v485
      %v497 = vpack.c.b16 %v488, %v487
      %v498 = vpack.c.b16 %v490, %v489
      %v501 = vunpack.c.l.b16 %v263
      %v502 = vunpack.c.l.b16 %v264
      %v503 = vpack.c.b16 %v502, %v501
      %v505 = vsel %vm333, %v491, 0
      %v508 = vsel %vm333, %v492, 0
      %v511 = vsel %vm333, %v493, 0
      %v514 = vsel %vm333, %v494, 0
      %v517 = vsel %vm333, %v495, 0
      %v520 = vsel %vm333, %v496, 0
      %v523 = vsel %vm333, %v497, 0
      %v526 = vsel %vm333, %v498, 0
      %v529 = vsel %vm358, %v503, 0
      %531 = vmatprep.subr.bf16.mxu0 0
      %532 = vmatpush1.bf16.msra.mxu0 %v529
      %533 = vmatprep.subr.bf16.mxu0 0
      %534 = vmatpush1.bf16.msra.mxu0 0
      %535 = vmatprep.subr.bf16.mxu0 0
      %536 = vmatpush1.bf16.msra.mxu0 0
      %537 = vmatprep.subr.bf16.mxu0 0
      %538 = vmatpush1.bf16.msra.mxu0 0
      %539 = vmatprep.subr.bf16.mxu0 0
      %540 = vmatpush1.bf16.msra.mxu0 0
      %541 = vmatprep.subr.bf16.mxu0 0
      %542 = vmatpush1.bf16.msra.mxu0 0
      %543 = vmatprep.subr.bf16.mxu0 0
      %544 = vmatpush1.bf16.msra.mxu0 0
      %545 = vmatprep.subr.bf16.mxu0 0
      %546 = vmatpush1.bf16.msra.mxu0 0
      %547 = vmatprep.subr.bf16.mxu0 0
      %548 = vmatpush1.bf16.msra.mxu0 0
      %549 = vmatprep.subr.bf16.mxu0 0
      %550 = vmatpush1.bf16.msra.mxu0 0
      %551 = vmatprep.subr.bf16.mxu0 0
      %552 = vmatpush1.bf16.msra.mxu0 0
      %553 = vmatprep.subr.bf16.mxu0 0
      %554 = vmatpush1.bf16.msra.mxu0 0
      %555 = vmatprep.subr.bf16.mxu0 0
      %556 = vmatpush1.bf16.msra.mxu0 0
      %557 = vmatprep.subr.bf16.mxu0 0
      %558 = vmatpush1.bf16.msra.mxu0 0
      %559 = vmatprep.subr.bf16.mxu0 0
      %560 = vmatpush1.bf16.msra.mxu0 0
      %561 = vmatprep.subr.bf16.mxu0 0
      %562 = vmatpush1.bf16.msra.mxu0 0
      %563 = vmatprep.mubr.bf16.mxu0 0
      %564 = vmatmul.mubr.bf16.gmra.mrb[0].mxu0 %v505
      %v565 = vpop.f32.mrb[0].mxu0
      %v566 = vadd.f32 %v397, %v565
      %v567 = vpop.f32.mrb[0].mxu0
      %v568 = vpop.f32.mrb[0].mxu0
      %v569 = vadd.f32 %v400, %v568
      %v570 = vpop.f32.mrb[0].mxu0
      %571 = vmatprep.mubr.bf16.mxu0 0
      %572 = vmatmul.mubr.bf16.gmra.mrb[0].mxu0 %v508
      %v573 = vpop.f32.mrb[0].mxu0
      %v574 = vadd.f32 %v405, %v573
      %v575 = vpop.f32.mrb[0].mxu0
      %v576 = vpop.f32.mrb[0].mxu0
      %v577 = vadd.f32 %v408, %v576
      %v578 = vpop.f32.mrb[0].mxu0
      %579 = vmatprep.mubr.bf16.mxu0 0
      %580 = vmatmul.mubr.bf16.gmra.mrb[0].mxu0 %v511
      %v581 = vpop.f32.mrb[0].mxu0
      %v582 = vadd.f32 %v413, %v581
      %v583 = vpop.f32.mrb[0].mxu0
      %v584 = vpop.f32.mrb[0].mxu0
      %v585 = vadd.f32 %v416, %v584
      %v586 = vpop.f32.mrb[0].mxu0
      %587 = vmatprep.mubr.bf16.mxu0 0
      %588 = vmatmul.mubr.bf16.gmra.mrb[0].mxu0 %v514
      %v589 = vpop.f32.mrb[0].mxu0
      %v590 = vadd.f32 %v421, %v589
      %v591 = vpop.f32.mrb[0].mxu0
      %v592 = vpop.f32.mrb[0].mxu0
      %v593 = vadd.f32 %v424, %v592
      %v594 = vpop.f32.mrb[0].mxu0
      %595 = vmatprep.mubr.bf16.mxu0 0
      %596 = vmatmul.mubr.bf16.gmra.mrb[0].mxu0 %v517
      %v597 = vpop.f32.mrb[0].mxu0
      %v598 = vadd.f32 %v429, %v597
      %v599 = vpop.f32.mrb[0].mxu0
      %v600 = vpop.f32.mrb[0].mxu0
      %v601 = vadd.f32 %v432, %v600
      %v602 = vpop.f32.mrb[0].mxu0
      %603 = vmatprep.mubr.bf16.mxu0 0
      %604 = vmatmul.mubr.bf16.gmra.mrb[0].mxu0 %v520
      %v605 = vpop.f32.mrb[0].mxu0
      %v606 = vadd.f32 %v437, %v605
      %v607 = vpop.f32.mrb[0].mxu0
      %v608 = vpop.f32.mrb[0].mxu0
      %v609 = vadd.f32 %v440, %v608
      %v610 = vpop.f32.mrb[0].mxu0
      %611 = vmatprep.mubr.bf16.mxu0 0
      %612 = vmatmul.mubr.bf16.gmra.mrb[0].mxu0 %v523
      %v613 = vpop.f32.mrb[0].mxu0
      %v614 = vadd.f32 %v445, %v613
      %v615 = vpop.f32.mrb[0].mxu0
      %v616 = vpop.f32.mrb[0].mxu0
      %v617 = vadd.f32 %v448, %v616
      %v618 = vpop.f32.mrb[0].mxu0
      %619 = vmatprep.mubr.bf16.mxu0 0
      %620 = vmatmul.mubr.bf16.gmra.mrb[0].mxu0 %v526
      %v621 = vpop.f32.mrb[0].mxu0
      %v622 = vadd.f32 %v453, %v621
      %v623 = vpop.f32.mrb[0].mxu0
      %v624 = vpop.f32.mrb[0].mxu0
      %v625 = vadd.f32 %v456, %v624
      %v626 = vpop.f32.mrb[0].mxu0
      %627 = vdwg.mxu0
      %s628 = sadd.s32 %s243, 2
      %s629 = smul.u32 %s628, 2
      %s630 = smul.addr %s629, 4
      %s631 = scalar_lea.vmem %s220, %s630
      %v632 = vld [vmem:[%s631] sm:$0xf]
      %v633 = vld [vmem:[%s631 + $0x4] sm:$0xf]
      %v634 = vld [vmem:[%s631 + $0x8] sm:$0xf]
      %v635 = vld [vmem:[%s631 + $0xc] sm:$0xf]
      %v636 = vld [vmem:[%s631 + $0x10] sm:$0xf]
      %v637 = vld [vmem:[%s631 + $0x14] sm:$0xf]
      %v638 = vld [vmem:[%s631 + $0x18] sm:$0xf]
      %v639 = vld [vmem:[%s631 + $0x1c] sm:$0xf]
      %v640 = vld [vmem:[%s631 + $0x20] sm:$0xf]
      %v641 = vld [vmem:[%s631 + $0x24] sm:$0xf]
      %v642 = vld [vmem:[%s631 + $0x28] sm:$0xf]
      %v643 = vld [vmem:[%s631 + $0x2c] sm:$0xf]
      %v644 = vld [vmem:[%s631 + $0x30] sm:$0xf]
      %v645 = vld [vmem:[%s631 + $0x34] sm:$0xf]
      %v646 = vld [vmem:[%s631 + $0x38] sm:$0xf]
      %v647 = vld [vmem:[%s631 + $0x3c] sm:$0xf]
      %s648 = scalar_lea.vmem %s224, 16
      %v649 = vld [vmem:[%s648] sm:$0xf]
      %v650 = vld [vmem:[%s648 + $0x4] sm:$0x3]
      %v667 = vunpack.c.l.b16 %v632
      %v668 = vunpack.c.l.b16 %v633
      %v669 = vunpack.c.l.b16 %v634
      %v670 = vunpack.c.l.b16 %v635
      %v671 = vunpack.c.l.b16 %v636
      %v672 = vunpack.c.l.b16 %v637
      %v673 = vunpack.c.l.b16 %v638
      %v674 = vunpack.c.l.b16 %v639
      %v675 = vunpack.c.l.b16 %v640
      %v676 = vunpack.c.l.b16 %v641
      %v677 = vunpack.c.l.b16 %v642
      %v678 = vunpack.c.l.b16 %v643
      %v679 = vunpack.c.l.b16 %v644
      %v680 = vunpack.c.l.b16 %v645
      %v681 = vunpack.c.l.b16 %v646
      %v682 = vunpack.c.l.b16 %v647
      %v683 = vpack.c.b16 %v668, %v667
      %v684 = vpack.c.b16 %v670, %v669
      %v685 = vpack.c.b16 %v672, %v671
      %v686 = vpack.c.b16 %v674, %v673
      %v687 = vpack.c.b16 %v676, %v675
      %v688 = vpack.c.b16 %v678, %v677
      %v689 = vpack.c.b16 %v680, %v679
      %v690 = vpack.c.b16 %v682, %v681
      %v693 = vunpack.c.l.b16 %v649
      %v694 = vunpack.c.l.b16 %v650
      %v695 = vpack.c.b16 %v694, %v693
      %v697 = vsel %vm333, %v683, 0
      %v700 = vsel %vm333, %v684, 0
      %v703 = vsel %vm333, %v685, 0
      %v706 = vsel %vm333, %v686, 0
      %v709 = vsel %vm333, %v687, 0
      %v712 = vsel %vm333, %v688, 0
      %v715 = vsel %vm333, %v689, 0
      %v718 = vsel %vm333, %v690, 0
      %v721 = vsel %vm358, %v695, 0
      %723 = vmatprep.subr.bf16.mxu0 0
      %724 = vmatpush1.bf16.msra.mxu0 %v721
      %725 = vmatprep.subr.bf16.mxu0 0
      %726 = vmatpush1.bf16.msra.mxu0 0
      %727 = vmatprep.subr.bf16.mxu0 0
      %728 = vmatpush1.bf16.msra.mxu0 0
      %729 = vmatprep.subr.bf16.mxu0 0
      %730 = vmatpush1.bf16.msra.mxu0 0
      %731 = vmatprep.subr.bf16.mxu0 0
      %732 = vmatpush1.bf16.msra.mxu0 0
      %733 = vmatprep.subr.bf16.mxu0 0
      %734 = vmatpush1.bf16.msra.mxu0 0
      %735 = vmatprep.subr.bf16.mxu0 0
      %736 = vmatpush1.bf16.msra.mxu0 0
      %737 = vmatprep.subr.bf16.mxu0 0
      %738 = vmatpush1.bf16.msra.mxu0 0
      %739 = vmatprep.subr.bf16.mxu0 0
      %740 = vmatpush1.bf16.msra.mxu0 0
      %741 = vmatprep.subr.bf16.mxu0 0
      %742 = vmatpush1.bf16.msra.mxu0 0
      %743 = vmatprep.subr.bf16.mxu0 0
      %744 = vmatpush1.bf16.msra.mxu0 0
      %745 = vmatprep.subr.bf16.mxu0 0
      %746 = vmatpush1.bf16.msra.mxu0 0
      %747 = vmatprep.subr.bf16.mxu0 0
      %748 = vmatpush1.bf16.msra.mxu0 0
      %749 = vmatprep.subr.bf16.mxu0 0
      %750 = vmatpush1.bf16.msra.mxu0 0
      %751 = vmatprep.subr.bf16.mxu0 0
      %752 = vmatpush1.bf16.msra.mxu0 0
      %753 = vmatprep.subr.bf16.mxu0 0
      %754 = vmatpush1.bf16.msra.mxu0 0
      %755 = vmatprep.mubr.bf16.mxu0 0
      %756 = vmatmul.mubr.bf16.gmra.mrb[0].mxu0 %v697
      %v757 = vpop.f32.mrb[0].mxu0
      %v758 = vadd.f32 0.0, %v757
      %v759 = vpop.f32.mrb[0].mxu0
      %v760 = vpop.f32.mrb[0].mxu0
      %v761 = vadd.f32 0.0, %v760
      %v762 = vpop.f32.mrb[0].mxu0
      %763 = vmatprep.mubr.bf16.mxu0 0
      %764 = vmatmul.mubr.bf16.gmra.mrb[0].mxu0 %v700
      %v765 = vpop.f32.mrb[0].mxu0
      %v766 = vadd.f32 0.0, %v765
      %v767 = vpop.f32.mrb[0].mxu0
      %v768 = vpop.f32.mrb[0].mxu0
      %v769 = vadd.f32 0.0, %v768
      %v770 = vpop.f32.mrb[0].mxu0
      %771 = vmatprep.mubr.bf16.mxu0 0
      %772 = vmatmul.mubr.bf16.gmra.mrb[0].mxu0 %v703
      %v773 = vpop.f32.mrb[0].mxu0
      %v774 = vadd.f32 0.0, %v773
      %v775 = vpop.f32.mrb[0].mxu0
      %v776 = vpop.f32.mrb[0].mxu0
      %v777 = vadd.f32 0.0, %v776
      %v778 = vpop.f32.mrb[0].mxu0
      %779 = vmatprep.mubr.bf16.mxu0 0
      %780 = vmatmul.mubr.bf16.gmra.mrb[0].mxu0 %v706
      %v781 = vpop.f32.mrb[0].mxu0
      %v782 = vadd.f32 0.0, %v781
      %v783 = vpop.f32.mrb[0].mxu0
      %v784 = vpop.f32.mrb[0].mxu0
      %v785 = vadd.f32 0.0, %v784
      %v786 = vpop.f32.mrb[0].mxu0
      %787 = vmatprep.mubr.bf16.mxu0 0
      %788 = vmatmul.mubr.bf16.gmra.mrb[0].mxu0 %v709
      %v789 = vpop.f32.mrb[0].mxu0
      %v790 = vadd.f32 0.0, %v789
      %v791 = vpop.f32.mrb[0].mxu0
      %v792 = vpop.f32.mrb[0].mxu0
      %v793 = vadd.f32 0.0, %v792
      %v794 = vpop.f32.mrb[0].mxu0
      %795 = vmatprep.mubr.bf16.mxu0 0
      %796 = vmatmul.mubr.bf16.gmra.mrb[0].mxu0 %v712
      %v797 = vpop.f32.mrb[0].mxu0
      %v798 = vadd.f32 0.0, %v797
      %v799 = vpop.f32.mrb[0].mxu0
      %v800 = vpop.f32.mrb[0].mxu0
      %v801 = vadd.f32 0.0, %v800
      %v802 = vpop.f32.mrb[0].mxu0
      %803 = vmatprep.mubr.bf16.mxu0 0
      %804 = vmatmul.mubr.bf16.gmra.mrb[0].mxu0 %v715
      %v805 = vpop.f32.mrb[0].mxu0
      %v806 = vadd.f32 0.0, %v805
      %v807 = vpop.f32.mrb[0].mxu0
      %v808 = vpop.f32.mrb[0].mxu0
      %v809 = vadd.f32 0.0, %v808
      %v810 = vpop.f32.mrb[0].mxu0
      %811 = vmatprep.mubr.bf16.mxu0 0
      %812 = vmatmul.mubr.bf16.gmra.mrb[0].mxu0 %v718
      %v813 = vpop.f32.mrb[0].mxu0
      %v814 = vadd.f32 0.0, %v813
      %v815 = vpop.f32.mrb[0].mxu0
      %v816 = vpop.f32.mrb[0].mxu0
      %v817 = vadd.f32 0.0, %v816
      %v818 = vpop.f32.mrb[0].mxu0
      %819 = vdwg.mxu0
      %v820 = vadd.f32 %v566, %v758
      %v821 = vadd.f32 %v569, %v761
      %v822 = vadd.f32 %v574, %v766
      %v823 = vadd.f32 %v577, %v769
      %v824 = vadd.f32 %v582, %v774
      %v825 = vadd.f32 %v585, %v777
      %v826 = vadd.f32 %v590, %v782
      %v827 = vadd.f32 %v593, %v785
      %v828 = vadd.f32 %v598, %v790
      %v829 = vadd.f32 %v601, %v793
      %v830 = vadd.f32 %v606, %v798
      %v831 = vadd.f32 %v609, %v801
      %v832 = vadd.f32 %v614, %v806
      %v833 = vadd.f32 %v617, %v809
      %v834 = vadd.f32 %v622, %v814
      %v835 = vadd.f32 %v625, %v817
      %v836 = vld [vmem:[%s227] sm:$0x1]
      %v838 = vlaneseq
      %v839 = vshrl.u32 %v838, 7
      %v840 = vsub.s32 0, %v839
      %v841 = vrot.slane %v836, %v840
      %v843 = vadd.f32 %v820, %v841
      %v844 = vadd.f32 %v821, %v841
      %v845 = vadd.f32 %v822, %v841
      %v846 = vadd.f32 %v823, %v841
      %v847 = vadd.f32 %v824, %v841
      %v848 = vadd.f32 %v825, %v841
      %v849 = vadd.f32 %v826, %v841
      %v850 = vadd.f32 %v827, %v841
      %v851 = vadd.f32 %v828, %v841
      %v852 = vadd.f32 %v829, %v841
      %v853 = vadd.f32 %v830, %v841
      %v854 = vadd.f32 %v831, %v841
      %v855 = vadd.f32 %v832, %v841
      %v856 = vadd.f32 %v833, %v841
      %v857 = vadd.f32 %v834, %v841
      %v858 = vadd.f32 %v835, %v841
      %v859 = vmax.f32 %v843, 0.0
      %v860 = vmax.f32 %v844, 0.0
      %v861 = vmax.f32 %v845, 0.0
      %v862 = vmax.f32 %v846, 0.0
      %v863 = vmax.f32 %v847, 0.0
      %v864 = vmax.f32 %v848, 0.0
      %v865 = vmax.f32 %v849, 0.0
      %v866 = vmax.f32 %v850, 0.0
      %v867 = vmax.f32 %v851, 0.0
      %v868 = vmax.f32 %v852, 0.0
      %v869 = vmax.f32 %v853, 0.0
      %v870 = vmax.f32 %v854, 0.0
      %v871 = vmax.f32 %v855, 0.0
      %v872 = vmax.f32 %v856, 0.0
      %v873 = vmax.f32 %v857, 0.0
      %v874 = vmax.f32 %v858, 0.0
      %v875 = vpack.c.bf16 %v860, %v859
      %v876 = vpack.c.bf16 %v862, %v861
      %v877 = vpack.c.bf16 %v864, %v863
      %v878 = vpack.c.bf16 %v866, %v865
      %v879 = vpack.c.bf16 %v868, %v867
      %v880 = vpack.c.bf16 %v870, %v869
      %v881 = vpack.c.bf16 %v872, %v871
      %v882 = vpack.c.bf16 %v874, %v873
      %v891 = vunpack.c.l.b16 %v875
      %v892 = vunpack.c.h.b16 %v875
      %v893 = vunpack.c.l.b16 %v876
      %v894 = vunpack.c.h.b16 %v876
      %v895 = vunpack.c.l.b16 %v877
      %v896 = vunpack.c.h.b16 %v877
      %v897 = vunpack.c.l.b16 %v878
      %v898 = vunpack.c.h.b16 %v878
      %v899 = vunpack.c.l.b16 %v879
      %v900 = vunpack.c.h.b16 %v879
      %v901 = vunpack.c.l.b16 %v880
      %v902 = vunpack.c.h.b16 %v880
      %v903 = vunpack.c.l.b16 %v881
      %v904 = vunpack.c.h.b16 %v881
      %v905 = vunpack.c.l.b16 %v882
      %v906 = vunpack.c.h.b16 %v882
      %v907 = vpack.c.b16 %v891, %v891
      %v908 = vpack.c.b16 %v892, %v892
      %v909 = vpack.c.b16 %v893, %v893
      %v910 = vpack.c.b16 %v894, %v894
      %v911 = vpack.c.b16 %v895, %v895
      %v912 = vpack.c.b16 %v896, %v896
      %v913 = vpack.c.b16 %v897, %v897
      %v914 = vpack.c.b16 %v898, %v898
      %v915 = vpack.c.b16 %v899, %v899
      %v916 = vpack.c.b16 %v900, %v900
      %v917 = vpack.c.b16 %v901, %v901
      %v918 = vpack.c.b16 %v902, %v902
      %v919 = vpack.c.b16 %v903, %v903
      %v920 = vpack.c.b16 %v904, %v904
      %v921 = vpack.c.b16 %v905, %v905
      %v922 = vpack.c.b16 %v906, %v906
      %vm939 = vcmask 60416
      %940 = vst.msk [vmem:[%s240] sm:$0xf] %vm939, %v907
      %941 = vst.msk [vmem:[%s240 + $0x4] sm:$0xf] %vm939, %v908
      %942 = vst.msk [vmem:[%s240 + $0x8] sm:$0xf] %vm939, %v909
      %943 = vst.msk [vmem:[%s240 + $0xc] sm:$0xf] %vm939, %v910
      %944 = vst.msk [vmem:[%s240 + $0x10] sm:$0xf] %vm939, %v911
      %945 = vst.msk [vmem:[%s240 + $0x14] sm:$0xf] %vm939, %v912
      %946 = vst.msk [vmem:[%s240 + $0x18] sm:$0xf] %vm939, %v913
      %947 = vst.msk [vmem:[%s240 + $0x1c] sm:$0xf] %vm939, %v914
      %948 = vst.msk [vmem:[%s240 + $0x20] sm:$0xf] %vm939, %v915
      %949 = vst.msk [vmem:[%s240 + $0x24] sm:$0xf] %vm939, %v916
      %950 = vst.msk [vmem:[%s240 + $0x28] sm:$0xf] %vm939, %v917
      %951 = vst.msk [vmem:[%s240 + $0x2c] sm:$0xf] %vm939, %v918
      %952 = vst.msk [vmem:[%s240 + $0x30] sm:$0xf] %vm939, %v919
      %953 = vst.msk [vmem:[%s240 + $0x34] sm:$0xf] %vm939, %v920
      %954 = vst.msk [vmem:[%s240 + $0x38] sm:$0xf] %vm939, %v921
      %955 = vst.msk [vmem:[%s240 + $0x3c] sm:$0xf] %vm939, %v922
      %s956 = smul.u32 8, %s21
      %p957 = scmp.lt.s32.totalorder %s19, 1
      %s958 = scalar_select %p957, %s19, 1
      %p959 = scmp.lt.s32.totalorder %s956, 15
      %s960 = scalar_select %p959, %s956, 15
      %p961 = scmp.lt.s32.totalorder %s20, 0
      %s962 = scalar_select %p961, %s20, 0
      %s963 = smul.addr %s960, 2
      %s964 = sadd.s32 %s962, %s963
      %s965 = smul.addr %s958, 32
      %s966 = sadd.s32 %s964, %s965
      %s967 = smul.addr %s966, 4
      %s968 = scalar_lea.vmem %s3, %s967
      // Predicated region
      $region33: #{conv_block_forward.3} parent=31 // pred_check
        %p969 = pneg %p133
      $region34: #{conv_block_forward.3} parent=31 // pred_check_branch
        %971 = sbr.rel (%p969) target = $region36
      $region35: #{conv_block_forward.3} parent=31 // pred_region
        %s972 = smul.u32 8, %s21
      $region36: #{conv_block_forward.3} parent=31 // pred_fallthru
        _
    $region32: #{conv_block_forward.3} parent=5 // pred_fallthru
      _
    %p973 = scmp.le.s32.totalorder 2, %s9
    // Predicated region
    $region37: #{conv_block_forward.3} parent=5 // pred_check
      %p974 = pneg %p973
    $region38: #{conv_block_forward.3} parent=5 // pred_check_branch
      %976 = sbr.rel (%p974) target = $region40
    $region39: #{conv_block_forward.3} parent=5 // pred_region
      %s977 = ssub.s32 %s9, 2
      // Predicated region
      $region41: #{conv_block_forward.3} parent=39 // pred_check
        %p978 = pneg %p139
      $region42: #{conv_block_forward.3} parent=39 // pred_check_branch
        %980 = sbr.rel (%p978) target = $region44
      $region43: #{conv_block_forward.3} parent=39 // pred_region
        %s981 = smul.u32 8, %s24
        %p982 = scmp.lt.s32.totalorder %s22, 1
        %s983 = scalar_select %p982, %s22, 1
        %p984 = scmp.lt.s32.totalorder %s981, 15
        %s985 = scalar_select %p984, %s981, 15
        %p986 = scmp.lt.s32.totalorder %s23, 0
        %s987 = scalar_select %p986, %s23, 0
        %s988 = smul.addr %s985, 2
        %s989 = sadd.s32 %s987, %s988
        %s990 = smul.addr %s983, 32
        %s991 = sadd.s32 %s989, %s990
        %s992 = smul.addr %s991, 4
        %s993 = scalar_lea.vmem %s3, %s992
      $region44: #{conv_block_forward.3} parent=39 // pred_fallthru
        _
    $region40: #{conv_block_forward.3} parent=5 // pred_fallthru
      _
  $region6: #{conv_block_forward.3} parent=0 // loop_footer
    %s13 = sadd.s32 1, %s9
  $region7: #{conv_block_forward.3} parent=0 // loop_footer_branch
    %8 = sbr.rel target = $region3
  $region8: #{conv_block_forward.3} parent=0 // loop_exit
    _

// kernel: conv_block_forward.4
$region0: #{conv_block_forward.4}
  #allocation0 [shape = 'u32[]', space=smem, size = 0x4, offset = 0x4, fixed_abs, tag = 'smem constant byte address 0x4 - core index']
  #allocation1 [shape = 'u32[144,128]{1,0:T(1,128)}', space=vmem, size = 0x12000, scoped, tag = 'internal scratch']
  %s0 = inlined_call_operand.vmem [shape: bf16[2,18,16,24], index: 0, kind: input, shape index: {}]
  %s1 = inlined_call_operand.vmem [shape: bf16[3,24,8], index: 1, kind: input, shape index: {}]
  %s2 = inlined_call_operand.vmem [shape: f32[1,8], index: 2, kind: input, shape index: {}]
  %s3 = inlined_call_operand.vmem [shape: bf16[2,16,16,8], index: 3, kind: output, shape index: {}]
  %s4 = sld [smem:[#allocation0]]
  $region45: #{conv_block_forward.4} parent=0
    _
  %s6 = ssub.s32 1, %s4
  %s7 = scalar_select 0, %s6, %s4
  loop: start=0, step=1, limit=6
  $region2: #{conv_block_forward.4} parent=0 // loop_pre_header
    _
  $region3: #{conv_block_forward.4} parent=0 // loop_header
    %s9 = sphi 0, %s13
    %p10 = scmp.ge.s32.totalorder %s9, 6
    %s16 = sphi 0, %s35
    %s17 = sphi 0, %s31
    %s18 = sphi 0, %s27
    %s19 = sphi 0, %s16
    %s20 = sphi 0, %s17
    %s21 = sphi 0, %s18
    %s22 = sphi 0, %s19
    %s23 = sphi 0, %s20
    %s24 = sphi 0, %s21
    %s38 = sphi 0, %s40
    %s41 = sphi 0, %s38
    %s42 = sphi 0, %s41
    %s58 = sphi 0, %s42
    %s64 = sphi 0, %s66
    %s67 = sphi 0, %s64
    %s68 = sphi 0, %s67
    %s84 = sphi 0, %s68
    %s90 = sphi 0, %s92
    %s93 = sphi 0, %s90
    %s94 = sphi 0, %s93
    %s110 = sphi 0, %s94
    %s120 = sphi 0, %s122
    %s123 = sphi 0, %s120
    %s124 = sphi 0, %s123
    %s140 = sphi 0, %s124
  $region4: #{conv_block_forward.4} parent=0 // loop_header_branch
    %12 = sbr.rel (%p10) target = $region8
  $region5: #{conv_block_forward.4} parent=0 // loop_body
    %s14 = ssub.s32 %s9, 1
    %s15 = ssub.s32 %s9, 2
    %s25 = sadd.s32 1, %s18
    %p26 = scmp.ge.s32.totalorder %s25, 2
    %s27 = scalar_select %p26, 0, %s25
    %s28 = sadd.s32 1, %s17
    %s29 = scalar_select %p26, %s28, %s17
    %p30 = scmp.ge.s32.totalorder %s29, 1
    %s31 = scalar_select %p30, 0, %s29
    %s32 = sadd.s32 1, %s16
    %s33 = scalar_select %p30, %s32, %s16
    %p34 = scmp.ge.s32.totalorder %s33, 2
    %s35 = scalar_select %p34, 0, %s33
    %s36 = ssub.s32 %s16, %s35
    %p37 = scmp.eq.s32.totalorder %s36, 0
    %s39 = sadd.s32 %s38, 1
    %s40 = scalar_select %p37, %s38, %s39
    %p43 = pneg %p37
    %p44 = scmp.eq.s32.totalorder %s9, 3
    %p45 = por %p43, %p44
    %p46 = scmp.ne.s32.totalorder %s38, %s41
    %p47 = scmp.eq.s32.totalorder %s9, 0
    %p48 = por %p46, %p47
    %p49 = scmp.ne.s32.totalorder %s38, %s41
    %p50 = scmp.eq.s32.totalorder %s14, 3
    %p51 = por %p49, %p50
    %p52 = scmp.ne.s32.totalorder %s41, %s42
    %p53 = scmp.eq.s32.totalorder %s14, 0
    %p54 = por %p52, %p53
    %p55 = scmp.ne.s32.totalorder %s41, %s42
    %p56 = scmp.eq.s32.totalorder %s15, 3
    %p57 = por %p55, %p56
    %p59 = scmp.ne.s32.totalorder %s42, %s58
    %p60 = scmp.eq.s32.totalorder %s15, 0
    %p61 = por %p59, %p60
    %s62 = ssub.s32 %s17, %s31
    %p63 = scmp.eq.s32.totalorder %s62, 0
    %s65 = sadd.s32 %s64, 1
    %s66 = scalar_select %p63, %s64, %s65
    %p69 = pneg %p63
    %p70 = scmp.eq.s32.totalorder %s9, 3
    %p71 = por %p69, %p70
    %p72 = scmp.ne.s32.totalorder %s64, %s67
    %p73 = scmp.eq.s32.totalorder %s9, 0
    %p74 = por %p72, %p73
    %p75 = scmp.ne.s32.totalorder %s64, %s67
    %p76 = scmp.eq.s32.totalorder %s14, 3
    %p77 = por %p75, %p76
    %p78 = scmp.ne.s32.totalorder %s67, %s68
    %p79 = scmp.eq.s32.totalorder %s14, 0
    %p80 = por %p78, %p79
    %p81 = scmp.ne.s32.totalorder %s67, %s68
    %p82 = scmp.eq.s32.totalorder %s15, 3
    %p83 = por %p81, %p82
    %p85 = scmp.ne.s32.totalorder %s68, %s84
    %p86 = scmp.eq.s32.totalorder %s15, 0
    %p87 = por %p85, %p86
    %s88 = ssub.s32 %s17, %s31
    %p89 = scmp.eq.s32.totalorder %s88, 0
    %s91 = sadd.s32 %s90, 1
    %s92 = scalar_select %p89, %s90, %s91
    %p95 = pneg %p89
    %p96 = scmp.eq.s32.totalorder %s9, 3
    %p97 = por %p95, %p96
    %p98 = scmp.ne.s32.totalorder %s90, %s93
    %p99 = scmp.eq.s32.totalorder %s9, 0
    %p100 = por %p98, %p99
    %p101 = scmp.ne.s32.totalorder %s90, %s93
    %p102 = scmp.eq.s32.totalorder %s14, 3
    %p103 = por %p101, %p102
    %p104 = scmp.ne.s32.totalorder %s93, %s94
    %p105 = scmp.eq.s32.totalorder %s14, 0
    %p106 = por %p104, %p105
    %p107 = scmp.ne.s32.totalorder %s93, %s94
    %p108 = scmp.eq.s32.totalorder %s15, 3
    %p109 = por %p107, %p108
    %p111 = scmp.ne.s32.totalorder %s94, %s110
    %p112 = scmp.eq.s32.totalorder %s15, 0
    %p113 = por %p111, %p112
    %s114 = ssub.s32 %s16, %s35
    %s115 = ssub.s32 %s18, %s27
    %s116 = sor.u32 %s114, %s115
    %s117 = ssub.s32 %s17, %s31
    %s118 = sor.u32 %s116, %s117
    %p119 = scmp.eq.s32.totalorder %s118, 0
    %s121 = sadd.s32 %s120, 1
    %s122 = scalar_select %p119, %s120, %s121
    %p125 = pneg %p119
    %p126 = scmp.eq.s32.totalorder %s9, 3
    %p127 = por %p125, %p126
    %p128 = scmp.ne.s32.totalorder %s120, %s123
    %p129 = scmp.eq.s32.totalorder %s9, 0
    %p130 = por %p128, %p129
    %p131 = scmp.ne.s32.totalorder %s120, %s123
    %p132 = scmp.eq.s32.totalorder %s14, 3
    %p133 = por %p131, %p132
    %p134 = scmp.ne.s32.totalorder %s123, %s124
    %p135 = scmp.eq.s32.totalorder %s14, 0
    %p136 = por %p134, %p135
    %p137 = scmp.ne.s32.totalorder %s123, %s124
    %p138 = scmp.eq.s32.totalorder %s15, 3
    %p139 = por %p137, %p138
    %p141 = scmp.ne.s32.totalorder %s124, %s140
    %p142 = scmp.eq.s32.totalorder %s15, 0
    %p143 = por %p141, %p142
    %p144 = scmp.le.s32.totalorder 1, %s9
    %p145 = scmp.lt.s32.totalorder %s9, 5
    %p146 = pnand %p144, %p145
    %p147 = pneg %p146
    // Predicated region
    $region9: #{conv_block_forward.4} parent=5 // pred_check
      _
    $region10: #{conv_block_forward.4} parent=5 // pred_check_branch
      %149 = sbr.rel (%p146) target = $region12
    $region11: #{conv_block_forward.4} parent=5 // pred_region
      %s150 = ssub.s32 %s9, 1
      // Predicated region
      $region13: #{conv_block_forward.4} parent=11 // pred_check
        %p151 = pneg %p80
      $region14: #{conv_block_forward.4} parent=11 // pred_check_branch
        %153 = sbr.rel (%p151) target = $region16
      $region15: #{conv_block_forward.4} parent=11 // pred_region
        %p154 = scmp.lt.s32.totalorder %s20, 0
        %s155 = scalar_select %p154, %s20, 0
        %s156 = smul.addr %s155, 4
        %s157 = scalar_lea.vmem %s1, %s156
      $region16: #{conv_block_forward.4} parent=11 // pred_fallthru
        _
      // Predicated region
      $region17: #{conv_block_forward.4} parent=11 // pred_check
        %p158 = pneg %p106
      $region18: #{conv_block_forward.4} parent=11 // pred_check_branch
        %160 = sbr.rel (%p158) target = $region20
      $region19: #{conv_block_forward.4} parent=11 // pred_region
        %p161 = scmp.lt.s32.totalorder %s20, 0
        %s162 = scalar_select %p161, %s20, 0
        %s163 = scalar_lea.vmem %s2, %s162
      $region20: #{conv_block_forward.4} parent=11 // pred_fallthru
        _
    $region12: #{conv_block_forward.4} parent=5 // pred_fallthru
      _
    %p164 = scmp.lt.s32.totalorder %s9, 4
    // Predicated region
    $region21: #{conv_block_forward.4} parent=5 // pred_check
      %p165 = pneg %p164
    $region22: #{conv_block_forward.4} parent=5 // pred_check_branch
      %167 = sbr.rel (%p165) target = $region24
    $region23: #{conv_block_forward.4} parent=5 // pred_region
      // Predicated region
      $region25: #{conv_block_forward.4} parent=23 // pred_check
        %p168 = pneg %p48
      $region26: #{conv_block_forward.4} parent=23 // pred_check_branch
        %170 = sbr.rel (%p168) target = $region28
      $region27: #{conv_block_forward.4} parent=23 // pred_region
        %p171 = scmp.lt.s32.totalorder %s16, 1
        %s172 = scalar_select %p171, %s16, 1
        %s173 = smul.addr %s172, 36
        %s174 = smul.addr %s173, 4
        %s175 = scalar_lea.vmem %s0, %s174
      $region28: #{conv_block_forward.4} parent=23 // pred_fallthru
        _
    $region24: #{conv_block_forward.4} parent=5 // pred_fallthru
      _
    %p176 = scmp.le.s32.totalorder 1, %s9
    %p177 = scmp.lt.s32.totalorder %s9, 5
    %p178 = pnand %p176, %p177
    %p179 = pneg %p178
    // Predicated region
    $region29: #{conv_block_forward.4} parent=5 // pred_check
      _
    $region30: #{conv_block_forward.4} parent=5 // pred_check_branch
      %181 = sbr.rel (%p178) target = $region32
    $region31: #{conv_block_forward.4} parent=5 // pred_region
      %s182 = ssub.s32 %s9, 1
      %p183 = scmp.lt.s32.totalorder %s19, 1
      %s184 = scalar_select %p183, %s19, 1
      %s185 = smul.addr %s184, 36
      %s186 = smul.addr %s185, 4
      %s187 = scalar_lea.vmem %s0, %s186
      %p188 = pneg %p54
      %p189 = pneg %p51
      %p190 = scmp.lt.s32.totalorder %s20, 0
      %s191 = scalar_select %p190, %s20, 0
      %s192 = smul.addr %s191, 4
      %s193 = scalar_lea.vmem %s1, %s192
      %p194 = pneg %p80
      %p195 = pneg %p77
      %p196 = scmp.lt.s32.totalorder %s20, 0
      %s197 = scalar_select %p196, %s20, 0
      %s198 = scalar_lea.vmem %s2, %s197
      %p199 = pneg %p106
      %p200 = pneg %p103
      %p201 = pneg %p136
      %p202 = pneg %p133
      %s203 = smul.u32 8, %s21
      %p204 = scmp.lt.s32.totalorder %s19, 1
      %s205 = scalar_select %p204, %s19, 1
      %p206 = scmp.lt.s32.totalorder %s203, 15
      %s207 = scalar_select %p206, %s203, 15
      %p208 = scmp.lt.s32.totalorder %s20, 0
      %s209 = scalar_select %p208, %s20, 0
      %s210 = smul.addr %s207, 2
      %s211 = sadd.s32 %s209, %s210
      %s212 = smul.addr %s205, 32
      %s213 = sadd.s32 %s211, %s212
      %s214 = smul.addr %s213, 4
      %s215 = scalar_lea.vmem %s3, %s214
      %p216 = scmp.lt.s32.totalorder %s19, 1
      %s217 = scalar_select %p216, %s19, 1
      %s218 = smul.addr %s217, 36
      %s219 = smul.addr %s218, 4
      %s220 = scalar_lea.vmem %s0, %s219
      %p221 = scmp.lt.s32.totalorder %s20, 0
      %s222 = scalar_select %p221, %s20, 0
      %s223 = smul.addr %s222, 4
      %s224 = scalar_lea.vmem %s1, %s223
      %p225 = scmp.lt.s32.totalorder %s20, 0
      %s226 = scalar_select %p225, %s20, 0
      %s227 = scalar_lea.vmem %s2, %s226
      %s228 = smul.u32 8, %s21
      %p229 = scmp.lt.s32.totalorder %s19, 1
      %s230 = scalar_select %p229, %s19, 1
      %p231 = scmp.lt.s32.totalorder %s228, 15
      %s232 = scalar_select %p231, %s228, 15
      %p233 = scmp.lt.s32.totalorder %s20, 0
      %s234 = scalar_select %p233, %s20, 0
      %s235 = smul.addr %s232, 2
      %s236 = sadd.s32 %s234, %s235
      %s237 = smul.addr %s230, 32
      %s238 = sadd.s32 %s236, %s237
      %s239 = smul.addr %s238, 4
      %s240 = scalar_lea.vmem %s3, %s239
      %s241 = smul.u32 8, %s21
      %s243 = smul.u32 %s21, 8
      %s244 = smul.u32 %s243, 2
      %s245 = smul.addr %s244, 4
      %s246 = scalar_lea.vmem %s220, %s245
      %v247 = vld [vmem:[%s246] sm:$0xf]
      %v248 = vld [vmem:[%s246 + $0x4] sm:$0xf]
      %v249 = vld [vmem:[%s246 + $0x8] sm:$0xf]
      %v250 = vld [vmem:[%s246 + $0xc] sm:$0xf]
      %v251 = vld [vmem:[%s246 + $0x10] sm:$0xf]
      %v252 = vld [vmem:[%s246 + $0x14] sm:$0xf]
      %v253 = vld [vmem:[%s246 + $0x18] sm:$0xf]
      %v254 = vld [vmem:[%s246 + $0x1c] sm:$0xf]
      %v255 = vld [vmem:[%s246 + $0x20] sm:$0xf]
      %v256 = vld [vmem:[%s246 + $0x24] sm:$0xf]
      %v257 = vld [vmem:[%s246 + $0x28] sm:$0xf]
      %v258 = vld [vmem:[%s246 + $0x2c] sm:$0xf]
      %v259 = vld [vmem:[%s246 + $0x30] sm:$0xf]
      %v260 = vld [vmem:[%s246 + $0x34] sm:$0xf]
      %v261 = vld [vmem:[%s246 + $0x38] sm:$0xf]
      %v262 = vld [vmem:[%s246 + $0x3c] sm:$0xf]
      %v263 = vld [vmem:[%s224] sm:$0xf]
      %v264 = vld [vmem:[%s224 + $0x4] sm:$0xf]
      %v265 = vld [vmem:[%s224 + $0x8] sm:$0xf]
      %s266 = sadd.s32 %s243, 1
      %s267 = smul.u32 %s266, 2
      %s268 = smul.addr %s267, 4
      %s269 = scalar_lea.vmem %s220, %s268
      %v270 = vld [vmem:[%s269] sm:$0xf]
      %v271 = vld [vmem:[%s269 + $0x4] sm:$0xf]
      %v272 = vld [vmem:[%s269 + $0x8] sm:$0xf]
      %v273 = vld [vmem:[%s269 + $0xc] sm:$0xf]
      %v274 = vld [vmem:[%s269 + $0x10] sm:$0xf]
      %v275 = vld [vmem:[%s269 + $0x14] sm:$0xf]
      %v276 = vld [vmem:[%s269 + $0x18] sm:$0xf]
      %v277 = vld [vmem:[%s269 + $0x1c] sm:$0xf]
      %v278 = vld [vmem:[%s269 + $0x20] sm:$0xf]
      %v279 = vld [vmem:[%s269 + $0x24] sm:$0xf]
      %v280 = vld [vmem:[%s269 + $0x28] sm:$0xf]
      %v281 = vld [vmem:[%s269 + $0x2c] sm:$0xf]
      %v282 = vld [vmem:[%s269 + $0x30] sm:$0xf]
      %v283 = vld [vmem:[%s269 + $0x34] sm:$0xf]
      %v284 = vld [vmem:[%s269 + $0x38] sm:$0xf]
      %v285 = vld [vmem:[%s269 + $0x3c] sm:$0xf]
      %s286 = scalar_lea.vmem %s224, 12
      %v287 = vld [vmem:[%s286] sm:$0xf]
      %v288 = vld [vmem:[%s286 + $0x4] sm:$0xf]
      %v289 = vld [vmem:[%s286 + $0x8] sm:$0xf]
      %v306 = vunpack.c.l.b16 %v270
      %v307 = vunpack.c.l.b16 %v271
      %v308 = vunpack.c.l.b16 %v272
      %v309 = vunpack.c.l.b16 %v273
      %v310 = vunpack.c.l.b16 %v274
      %v311 = vunpack.c.l.b16 %v275
      %v312 = vunpack.c.l.b16 %v276
      %v313 = vunpack.c.l.b16 %v277
      %v314 = vunpack.c.l.b16 %v278
      %v315 = vunpack.c.l.b16 %v279
      %v316 = vunpack.c.l.b16 %v280
      %v317 = vunpack.c.l.b16 %v281
      %v318 = vunpack.c.l.b16 %v282
      %v319 = vunpack.c.l.b16 %v283
      %v320 = vunpack.c.l.b16 %v284
      %v321 = vunpack.c.l.b16 %v285
      %v322 = vpack.c.b16 %v307, %v306
      %v323 = vpack.c.b16 %v309, %v308
      %v324 = vpack.c.b16 %v311, %v310
      %v325 = vpack.c.b16 %v313, %v312
      %v326 = vpack.c.b16 %v315, %v314
      %v327 = vpack.c.b16 %v317, %v316
      %v328 = vpack.c.b16 %v319, %v318
      %v329 = vpack.c.b16 %v321, %v320
      %v333 = vunpack.c.l.b16 %v287
      %v334 = vunpack.c.l.b16 %v288
      %v335 = vunpack.c.l.b16 %v289
      %v336 = vpack.c.b16 %v334, %v333
      %v337 = vpack.c.b16 %v335, %v335
      %vm339 = vcmask 195584
      %v341 = vsel %vm339, %v322, 0
      %v344 = vsel %vm339, %v323, 0
      %v347 = vsel %vm339, %v324, 0
      %v350 = vsel %vm339, %v325, 0
      %v353 = vsel %vm339, %v326, 0
      %v356 = vsel %vm339, %v327, 0
      %v359 = vsel %vm339, %v328, 0
      %v362 = vsel %vm339, %v329, 0
      %vm364 = vcmask 1043456
      %v366 = vsel %vm364, %v337, 0
      %368 = vmatprep.subr.bf16.mxu0 0
      %369 = vmatpush1.bf16.msra.mxu0 %v336
      %370 = vmatprep.subr.bf16.mxu0 0
      %371 = vmatpush1.bf16.msra.mxu0 %v366
      %372 = vmatprep.subr.bf16.mxu0 0
      %373 = vmatpush1.bf16.msra.mxu0 0
      %374 = vmatprep.subr.bf16.mxu0 0
      %375 = vmatpush1.bf16.msra.mxu0 0
      %376 = vmatprep.subr.bf16.mxu0 0
      %377 = vmatpush1.bf16.msra.mxu0 0
      %378 = vmatprep.subr.bf16.mxu0 0
      %379 = vmatpush1.bf16.msra.mxu0 0
      %380 = vmatprep.subr.bf16.mxu0 0
      %381 = vmatpush1.bf16.msra.mxu0 0
      %382 = vmatprep.subr.bf16.mxu0 0
      %383 = vmatpush1.bf16.msra.mxu0 0
      %384 = vmatprep.subr.bf16.mxu0 0
      %385 = vmatpush1.bf16.msra.mxu0 0
      %386 = vmatprep.subr.bf16.mxu0 0
      %387 = vmatpush1.bf16.msra.mxu0 0
      %388 = vmatprep.subr.bf16.mxu0 0
      %389 = vmatpush1.bf16.msra.mxu0 0
      %390 = vmatprep.subr.bf16.mxu0 0
      %391 = vmatpush1.bf16.msra.mxu0 0
      %392 = vmatprep.subr.bf16.mxu0 0
      %393 = vmatpush1.bf16.msra.mxu0 0
      %394 = vmatprep.subr.bf16.mxu0 0
      %395 = vmatpush1.bf16.msra.mxu0 0
      %396 = vmatprep.subr.bf16.mxu0 0
      %397 = vmatpush1.bf16.msra.mxu0 0
      %398 = vmatprep.subr.bf16.mxu0 0
      %399 = vmatpush1.bf16.msra.mxu0 0
      %400 = vmatprep.mubr.bf16.mxu0 0
      %401 = vmatmul.mubr.bf16.gmra.mrb[0].mxu0 %v341
      %v402 = vpop.f32.mrb[0].mxu0
      %v403 = vadd.f32 0.0, %v402
      %v404 = vpop.f32.mrb[0].mxu0
      %v405 = vpop.f32.mrb[0].mxu0
      %v406 = vadd.f32 0.0, %v405
      %v407 = vpop.f32.mrb[0].mxu0
      %408 = vmatprep.mubr.bf16.mxu0 0
      %409 = vmatmul.mubr.bf16.gmra.mrb[0].mxu0 %v344
      %v410 = vpop.f32.mrb[0].mxu0
      %v411 = vadd.f32 0.0, %v410
      %v412 = vpop.f32.mrb[0].mxu0
      %v413 = vpop.f32.mrb[0].mxu0
      %v414 = vadd.f32 0.0, %v413
      %v415 = vpop.f32.mrb[0].mxu0
      %416 = vmatprep.mubr.bf16.mxu0 0
      %417 = vmatmul.mubr.bf16.gmra.mrb[0].mxu0 %v347
      %v418 = vpop.f32.mrb[0].mxu0
      %v419 = vadd.f32 0.0, %v418
      %v420 = vpop.f32.mrb[0].mxu0
      %v421 = vpop.f32.mrb[0].mxu0
      %v422 = vadd.f32 0.0, %v421
      %v423 = vpop.f32.mrb[0].mxu0
      %424 = vmatprep.mubr.bf16.mxu0 0
      %425 = vmatmul.mubr.bf16.gmra.mrb[0].mxu0 %v350
      %v426 = vpop.f32.mrb[0].mxu0
      %v427 = vadd.f32 0.0, %v426
      %v428 = vpop.f32.mrb[0].mxu0
      %v429 = vpop.f32.mrb[0].mxu0
      %v430 = vadd.f32 0.0, %v429
      %v431 = vpop.f32.mrb[0].mxu0
      %432 = vmatprep.mubr.bf16.mxu0 0
      %433 = vmatmul.mubr.bf16.gmra.mrb[0].mxu0 %v353
      %v434 = vpop.f32.mrb[0].mxu0
      %v435 = vadd.f32 0.0, %v434
      %v436 = vpop.f32.mrb[0].mxu0
      %v437 = vpop.f32.mrb[0].mxu0
      %v438 = vadd.f32 0.0, %v437
      %v439 = vpop.f32.mrb[0].mxu0
      %440 = vmatprep.mubr.bf16.mxu0 0
      %441 = vmatmul.mubr.bf16.gmra.mrb[0].mxu0 %v356
      %v442 = vpop.f32.mrb[0].mxu0
      %v443 = vadd.f32 0.0, %v442
      %v444 = vpop.f32.mrb[0].mxu0
      %v445 = vpop.f32.mrb[0].mxu0
      %v446 = vadd.f32 0.0, %v445
      %v447 = vpop.f32.mrb[0].mxu0
      %448 = vmatprep.mubr.bf16.mxu0 0
      %449 = vmatmul.mubr.bf16.gmra.mrb[0].mxu0 %v359
      %v450 = vpop.f32.mrb[0].mxu0
      %v451 = vadd.f32 0.0, %v450
      %v452 = vpop.f32.mrb[0].mxu0
      %v453 = vpop.f32.mrb[0].mxu0
      %v454 = vadd.f32 0.0, %v453
      %v455 = vpop.f32.mrb[0].mxu0
      %456 = vmatprep.mubr.bf16.mxu0 0
      %457 = vmatmul.mubr.bf16.gmra.mrb[0].mxu0 %v362
      %v458 = vpop.f32.mrb[0].mxu0
      %v459 = vadd.f32 0.0, %v458
      %v460 = vpop.f32.mrb[0].mxu0
      %v461 = vpop.f32.mrb[0].mxu0
      %v462 = vadd.f32 0.0, %v461
      %v463 = vpop.f32.mrb[0].mxu0
      %464 = vdwg.mxu0
      %v481 = vunpack.c.l.b16 %v247
      %v482 = vunpack.c.l.b16 %v248
      %v483 = vunpack.c.l.b16 %v249
      %v484 = vunpack.c.l.b16 %v250
      %v485 = vunpack.c.l.b16 %v251
      %v486 = vunpack.c.l.b16 %v252
      %v487 = vunpack.c.l.b16 %v253
      %v488 = vunpack.c.l.b16 %v254
      %v489 = vunpack.c.l.b16 %v255
      %v490 = vunpack.c.l.b16 %v256
      %v491 = vunpack.c.l.b16 %v257
      %v492 = vunpack.c.l.b16 %v258
      %v493 = vunpack.c.l.b16 %v259
      %v494 = vunpack.c.l.b16 %v260
      %v495 = vunpack.c.l.b16 %v261
      %v496 = vunpack.c.l.b16 %v262
      %v497 = vpack.c.b16 %v482, %v481
      %v498 = vpack.c.b16 %v484, %v483
      %v499 = vpack.c.b16 %v486, %v485
      %v500 = vpack.c.b16 %v488, %v487
      %v501 = vpack.c.b16 %v490, %v489
      %v502 = vpack.c.b16 %v492, %v491
      %v503 = vpack.c.b16 %v494, %v493
      %v504 = vpack.c.b16 %v496, %v495
      %v508 = vunpack.c.l.b16 %v263
      %v509 = vunpack.c.l.b16 %v264
      %v510 = vunpack.c.l.b16 %v265
      %v511 = vpack.c.b16 %v509, %v508
      %v512 = vpack.c.b16 %v510, %v510
      %v515 = vsel %vm339, %v497, 0
      %v518 = vsel %vm339, %v498, 0
      %v521 = vsel %vm339, %v499, 0
      %v524 = vsel %vm339, %v500, 0
      %v527 = vsel %vm339, %v501, 0
      %v530 = vsel %vm339, %v502, 0
      %v533 = vsel %vm339, %v503, 0
      %v536 = vsel %vm339, %v504, 0
      %v539 = vsel %vm364, %v512, 0
      %541 = vmatprep.subr.bf16.mxu0 0
      %542 = vmatpush1.bf16.msra.mxu0 %v511
      %543 = vmatprep.subr.bf16.mxu0 0
      %544 = vmatpush1.bf16.msra.mxu0 %v539
      %545 = vmatprep.subr.bf16.mxu0 0
      %546 = vmatpush1.bf16.msra.mxu0 0
      %547 = vmatprep.subr.bf16.mxu0 0
      %548 = vmatpush1.bf16.msra.mxu0 0
      %549 = vmatprep.subr.bf16.mxu0 0
      %550 = vmatpush1.bf16.msra.mxu0 0
      %551 = vmatprep.subr.bf16.mxu0 0
      %552 = vmatpush1.bf16.msra.mxu0 0
      %553 = vmatprep.subr.bf16.mxu0 0
      %554 = vmatpush1.bf16.msra.mxu0 0
      %555 = vmatprep.subr.bf16.mxu0 0
      %556 = vmatpush1.bf16.msra.mxu0 0
      %557 = vmatprep.subr.bf16.mxu0 0
      %558 = vmatpush1.bf16.msra.mxu0 0
      %559 = vmatprep.subr.bf16.mxu0 0
      %560 = vmatpush1.bf16.msra.mxu0 0
      %561 = vmatprep.subr.bf16.mxu0 0
      %562 = vmatpush1.bf16.msra.mxu0 0
      %563 = vmatprep.subr.bf16.mxu0 0
      %564 = vmatpush1.bf16.msra.mxu0 0
      %565 = vmatprep.subr.bf16.mxu0 0
      %566 = vmatpush1.bf16.msra.mxu0 0
      %567 = vmatprep.subr.bf16.mxu0 0
      %568 = vmatpush1.bf16.msra.mxu0 0
      %569 = vmatprep.subr.bf16.mxu0 0
      %570 = vmatpush1.bf16.msra.mxu0 0
      %571 = vmatprep.subr.bf16.mxu0 0
      %572 = vmatpush1.bf16.msra.mxu0 0
      %573 = vmatprep.mubr.bf16.mxu0 0
      %574 = vmatmul.mubr.bf16.gmra.mrb[0].mxu0 %v515
      %v575 = vpop.f32.mrb[0].mxu0
      %v576 = vadd.f32 %v403, %v575
      %v577 = vpop.f32.mrb[0].mxu0
      %v578 = vpop.f32.mrb[0].mxu0
      %v579 = vadd.f32 %v406, %v578
      %v580 = vpop.f32.mrb[0].mxu0
      %581 = vmatprep.mubr.bf16.mxu0 0
      %582 = vmatmul.mubr.bf16.gmra.mrb[0].mxu0 %v518
      %v583 = vpop.f32.mrb[0].mxu0
      %v584 = vadd.f32 %v411, %v583
      %v585 = vpop.f32.mrb[0].mxu0
      %v586 = vpop.f32.mrb[0].mxu0
      %v587 = vadd.f32 %v414, %v586
      %v588 = vpop.f32.mrb[0].mxu0
      %589 = vmatprep.mubr.bf16.mxu0 0
      %590 = vmatmul.mubr.bf16.gmra.mrb[0].mxu0 %v521
      %v591 = vpop.f32.mrb[0].mxu0
      %v592 = vadd.f32 %v419, %v591
      %v593 = vpop.f32.mrb[0].mxu0
      %v594 = vpop.f32.mrb[0].mxu0
      %v595 = vadd.f32 %v422, %v594
      %v596 = vpop.f32.mrb[0].mxu0
      %597 = vmatprep.mubr.bf16.mxu0 0
      %598 = vmatmul.mubr.bf16.gmra.mrb[0].mxu0 %v524
      %v599 = vpop.f32.mrb[0].mxu0
      %v600 = vadd.f32 %v427, %v599
      %v601 = vpop.f32.mrb[0].mxu0
      %v602 = vpop.f32.mrb[0].mxu0
      %v603 = vadd.f32 %v430, %v602
      %v604 = vpop.f32.mrb[0].mxu0
      %605 = vmatprep.mubr.bf16.mxu0 0
      %606 = vmatmul.mubr.bf16.gmra.mrb[0].mxu0 %v527
      %v607 = vpop.f32.mrb[0].mxu0
      %v608 = vadd.f32 %v435, %v607
      %v609 = vpop.f32.mrb[0].mxu0
      %v610 = vpop.f32.mrb[0].mxu0
      %v611 = vadd.f32 %v438, %v610
      %v612 = vpop.f32.mrb[0].mxu0
      %613 = vmatprep.mubr.bf16.mxu0 0
      %614 = vmatmul.mubr.bf16.gmra.mrb[0].mxu0 %v530
      %v615 = vpop.f32.mrb[0].mxu0
      %v616 = vadd.f32 %v443, %v615
      %v617 = vpop.f32.mrb[0].mxu0
      %v618 = vpop.f32.mrb[0].mxu0
      %v619 = vadd.f32 %v446, %v618
      %v620 = vpop.f32.mrb[0].mxu0
      %621 = vmatprep.mubr.bf16.mxu0 0
      %622 = vmatmul.mubr.bf16.gmra.mrb[0].mxu0 %v533
      %v623 = vpop.f32.mrb[0].mxu0
      %v624 = vadd.f32 %v451, %v623
      %v625 = vpop.f32.mrb[0].mxu0
      %v626 = vpop.f32.mrb[0].mxu0
      %v627 = vadd.f32 %v454, %v626
      %v628 = vpop.f32.mrb[0].mxu0
      %629 = vmatprep.mubr.bf16.mxu0 0
      %630 = vmatmul.mubr.bf16.gmra.mrb[0].mxu0 %v536
      %v631 = vpop.f32.mrb[0].mxu0
      %v632 = vadd.f32 %v459, %v631
      %v633 = vpop.f32.mrb[0].mxu0
      %v634 = vpop.f32.mrb[0].mxu0
      %v635 = vadd.f32 %v462, %v634
      %v636 = vpop.f32.mrb[0].mxu0
      %637 = vdwg.mxu0
      %s638 = sadd.s32 %s243, 2
      %s639 = smul.u32 %s638, 2
      %s640 = smul.addr %s639, 4
      %s641 = scalar_lea.vmem %s220, %s640
      %v642 = vld [vmem:[%s641] sm:$0xf]
      %v643 = vld [vmem:[%s641 + $0x4] sm:$0xf]
      %v644 = vld [vmem:[%s641 + $0x8] sm:$0xf]
      %v645 = vld [vmem:[%s641 + $0xc] sm:$0xf]
      %v646 = vld [vmem:[%s641 + $0x10] sm:$0xf]
      %v647 = vld [vmem:[%s641 + $0x14] sm:$0xf]
      %v648 = vld [vmem:[%s641 + $0x18] sm:$0xf]
      %v649 = vld [vmem:[%s641 + $0x1c] sm:$0xf]
      %v650 = vld [vmem:[%s641 + $0x20] sm:$0xf]
      %v651 = vld [vmem:[%s641 + $0x24] sm:$0xf]
      %v652 = vld [vmem:[%s641 + $0x28] sm:$0xf]
      %v653 = vld [vmem:[%s641 + $0x2c] sm:$0xf]
      %v654 = vld [vmem:[%s641 + $0x30] sm:$0xf]
      %v655 = vld [vmem:[%s641 + $0x34] sm:$0xf]
      %v656 = vld [vmem:[%s641 + $0x38] sm:$0xf]
      %v657 = vld [vmem:[%s641 + $0x3c] sm:$0xf]
      %s658 = scalar_lea.vmem %s224, 24
      %v659 = vld [vmem:[%s658] sm:$0xf]
      %v660 = vld [vmem:[%s658 + $0x4] sm:$0xf]
      %v661 = vld [vmem:[%s658 + $0x8] sm:$0xf]
      %v678 = vunpack.c.l.b16 %v642
      %v679 = vunpack.c.l.b16 %v643
      %v680 = vunpack.c.l.b16 %v644
      %v681 = vunpack.c.l.b16 %v645
      %v682 = vunpack.c.l.b16 %v646
      %v683 = vunpack.c.l.b16 %v647
      %v684 = vunpack.c.l.b16 %v648
      %v685 = vunpack.c.l.b16 %v649
      %v686 = vunpack.c.l.b16 %v650
      %v687 = vunpack.c.l.b16 %v651
      %v688 = vunpack.c.l.b16 %v652
      %v689 = vunpack.c.l.b16 %v653
      %v690 = vunpack.c.l.b16 %v654
      %v691 = vunpack.c.l.b16 %v655
      %v692 = vunpack.c.l.b16 %v656
      %v693 = vunpack.c.l.b16 %v657
      %v694 = vpack.c.b16 %v679, %v678
      %v695 = vpack.c.b16 %v681, %v680
      %v696 = vpack.c.b16 %v683, %v682
      %v697 = vpack.c.b16 %v685, %v684
      %v698 = vpack.c.b16 %v687, %v686
      %v699 = vpack.c.b16 %v689, %v688
      %v700 = vpack.c.b16 %v691, %v690
      %v701 = vpack.c.b16 %v693, %v692
      %v705 = vunpack.c.l.b16 %v659
      %v706 = vunpack.c.l.b16 %v660
      %v707 = vunpack.c.l.b16 %v661
      %v708 = vpack.c.b16 %v706, %v705
      %v709 = vpack.c.b16 %v707, %v707
      %v712 = vsel %vm339, %v694, 0
      %v715 = vsel %vm339, %v695, 0
      %v718 = vsel %vm339, %v696, 0
      %v721 = vsel %vm339, %v697, 0
      %v724 = vsel %vm339, %v698, 0
      %v727 = vsel %vm339, %v699, 0
      %v730 = vsel %vm339, %v700, 0
      %v733 = vsel %vm339, %v701, 0
      %v736 = vsel %vm364, %v709, 0
      %738 = vmatprep.subr.bf16.mxu0 0
      %739 = vmatpush1.bf16.msra.mxu0 %v708
      %740 = vmatprep.subr.bf16.mxu0 0
      %741 = vmatpush1.bf16.msra.mxu0 %v736
      %742 = vmatprep.subr.bf16.mxu0 0
      %743 = vmatpush1.bf16.msra.mxu0 0
      %744 = vmatprep.subr.bf16.mxu0 0
      %745 = vmatpush1.bf16.msra.mxu0 0
      %746 = vmatprep.subr.bf16.mxu0 0
      %747 = vmatpush1.bf16.msra.mxu0 0
      %748 = vmatprep.subr.bf16.mxu0 0
      %749 = vmatpush1.bf16.msra.mxu0 0
      %750 = vmatprep.subr.bf16.mxu0 0
      %751 = vmatpush1.bf16.msra.mxu0 0
      %752 = vmatprep.subr.bf16.mxu0 0
      %753 = vmatpush1.bf16.msra.mxu0 0
      %754 = vmatprep.subr.bf16.mxu0 0
      %755 = vmatpush1.bf16.msra.mxu0 0
      %756 = vmatprep.subr.bf16.mxu0 0
      %757 = vmatpush1.bf16.msra.mxu0 0
      %758 = vmatprep.subr.bf16.mxu0 0
      %759 = vmatpush1.bf16.msra.mxu0 0
      %760 = vmatprep.subr.bf16.mxu0 0
      %761 = vmatpush1.bf16.msra.mxu0 0
      %762 = vmatprep.subr.bf16.mxu0 0
      %763 = vmatpush1.bf16.msra.mxu0 0
      %764 = vmatprep.subr.bf16.mxu0 0
      %765 = vmatpush1.bf16.msra.mxu0 0
      %766 = vmatprep.subr.bf16.mxu0 0
      %767 = vmatpush1.bf16.msra.mxu0 0
      %768 = vmatprep.subr.bf16.mxu0 0
      %769 = vmatpush1.bf16.msra.mxu0 0
      %770 = vmatprep.mubr.bf16.mxu0 0
      %771 = vmatmul.mubr.bf16.gmra.mrb[0].mxu0 %v712
      %v772 = vpop.f32.mrb[0].mxu0
      %v773 = vadd.f32 0.0, %v772
      %v774 = vpop.f32.mrb[0].mxu0
      %v775 = vpop.f32.mrb[0].mxu0
      %v776 = vadd.f32 0.0, %v775
      %v777 = vpop.f32.mrb[0].mxu0
      %778 = vmatprep.mubr.bf16.mxu0 0
      %779 = vmatmul.mubr.bf16.gmra.mrb[0].mxu0 %v715
      %v780 = vpop.f32.mrb[0].mxu0
      %v781 = vadd.f32 0.0, %v780
      %v782 = vpop.f32.mrb[0].mxu0
      %v783 = vpop.f32.mrb[0].mxu0
      %v784 = vadd.f32 0.0, %v783
      %v785 = vpop.f32.mrb[0].mxu0
      %786 = vmatprep.mubr.bf16.mxu0 0
      %787 = vmatmul.mubr.bf16.gmra.mrb[0].mxu0 %v718
      %v788 = vpop.f32.mrb[0].mxu0
      %v789 = vadd.f32 0.0, %v788
      %v790 = vpop.f32.mrb[0].mxu0
      %v791 = vpop.f32.mrb[0].mxu0
      %v792 = vadd.f32 0.0, %v791
      %v793 = vpop.f32.mrb[0].mxu0
      %794 = vmatprep.mubr.bf16.mxu0 0
      %795 = vmatmul.mubr.bf16.gmra.mrb[0].mxu0 %v721
      %v796 = vpop.f32.mrb[0].mxu0
      %v797 = vadd.f32 0.0, %v796
      %v798 = vpop.f32.mrb[0].mxu0
      %v799 = vpop.f32.mrb[0].mxu0
      %v800 = vadd.f32 0.0, %v799
      %v801 = vpop.f32.mrb[0].mxu0
      %802 = vmatprep.mubr.bf16.mxu0 0
      %803 = vmatmul.mubr.bf16.gmra.mrb[0].mxu0 %v724
      %v804 = vpop.f32.mrb[0].mxu0
      %v805 = vadd.f32 0.0, %v804
      %v806 = vpop.f32.mrb[0].mxu0
      %v807 = vpop.f32.mrb[0].mxu0
      %v808 = vadd.f32 0.0, %v807
      %v809 = vpop.f32.mrb[0].mxu0
      %810 = vmatprep.mubr.bf16.mxu0 0
      %811 = vmatmul.mubr.bf16.gmra.mrb[0].mxu0 %v727
      %v812 = vpop.f32.mrb[0].mxu0
      %v813 = vadd.f32 0.0, %v812
      %v814 = vpop.f32.mrb[0].mxu0
      %v815 = vpop.f32.mrb[0].mxu0
      %v816 = vadd.f32 0.0, %v815
      %v817 = vpop.f32.mrb[0].mxu0
      %818 = vmatprep.mubr.bf16.mxu0 0
      %819 = vmatmul.mubr.bf16.gmra.mrb[0].mxu0 %v730
      %v820 = vpop.f32.mrb[0].mxu0
      %v821 = vadd.f32 0.0, %v820
      %v822 = vpop.f32.mrb[0].mxu0
      %v823 = vpop.f32.mrb[0].mxu0
      %v824 = vadd.f32 0.0, %v823
      %v825 = vpop.f32.mrb[0].mxu0
      %826 = vmatprep.mubr.bf16.mxu0 0
      %827 = vmatmul.mubr.bf16.gmra.mrb[0].mxu0 %v733
      %v828 = vpop.f32.mrb[0].mxu0
      %v829 = vadd.f32 0.0, %v828
      %v830 = vpop.f32.mrb[0].mxu0
      %v831 = vpop.f32.mrb[0].mxu0
      %v832 = vadd.f32 0.0, %v831
      %v833 = vpop.f32.mrb[0].mxu0
      %834 = vdwg.mxu0
      %v835 = vadd.f32 %v576, %v773
      %v836 = vadd.f32 %v579, %v776
      %v837 = vadd.f32 %v584, %v781
      %v838 = vadd.f32 %v587, %v784
      %v839 = vadd.f32 %v592, %v789
      %v840 = vadd.f32 %v595, %v792
      %v841 = vadd.f32 %v600, %v797
      %v842 = vadd.f32 %v603, %v800
      %v843 = vadd.f32 %v608, %v805
      %v844 = vadd.f32 %v611, %v808
      %v845 = vadd.f32 %v616, %v813
      %v846 = vadd.f32 %v619, %v816
      %v847 = vadd.f32 %v624, %v821
      %v848 = vadd.f32 %v627, %v824
      %v849 = vadd.f32 %v632, %v829
      %v850 = vadd.f32 %v635, %v832
      %v851 = vld [vmem:[%s227] sm:$0x1]
      %v853 = vlaneseq
      %v854 = vshrl.u32 %v853, 7
      %v855 = vsub.s32 0, %v854
      %v856 = vrot.slane %v851, %v855
      %v858 = vadd.f32 %v835, %v856
      %v859 = vadd.f32 %v836, %v856
      %v860 = vadd.f32 %v837, %v856
      %v861 = vadd.f32 %v838, %v856
      %v862 = vadd.f32 %v839, %v856
      %v863 = vadd.f32 %v840, %v856
      %v864 = vadd.f32 %v841, %v856
      %v865 = vadd.f32 %v842, %v856
      %v866 = vadd.f32 %v843, %v856
      %v867 = vadd.f32 %v844, %v856
      %v868 = vadd.f32 %v845, %v856
      %v869 = vadd.f32 %v846, %v856
      %v870 = vadd.f32 %v847, %v856
      %v871 = vadd.f32 %v848, %v856
      %v872 = vadd.f32 %v849, %v856
      %v873 = vadd.f32 %v850, %v856
      %v874 = vmax.f32 %v858, 0.0
      %v875 = vmax.f32 %v859, 0.0
      %v876 = vmax.f32 %v860, 0.0
      %v877 = vmax.f32 %v861, 0.0
      %v878 = vmax.f32 %v862, 0.0
      %v879 = vmax.f32 %v863, 0.0
      %v880 = vmax.f32 %v864, 0.0
      %v881 = vmax.f32 %v865, 0.0
      %v882 = vmax.f32 %v866, 0.0
      %v883 = vmax.f32 %v867, 0.0
      %v884 = vmax.f32 %v868, 0.0
      %v885 = vmax.f32 %v869, 0.0
      %v886 = vmax.f32 %v870, 0.0
      %v887 = vmax.f32 %v871, 0.0
      %v888 = vmax.f32 %v872, 0.0
      %v889 = vmax.f32 %v873, 0.0
      %v890 = vpack.c.bf16 %v875, %v874
      %v891 = vpack.c.bf16 %v877, %v876
      %v892 = vpack.c.bf16 %v879, %v878
      %v893 = vpack.c.bf16 %v881, %v880
      %v894 = vpack.c.bf16 %v883, %v882
      %v895 = vpack.c.bf16 %v885, %v884
      %v896 = vpack.c.bf16 %v887, %v886
      %v897 = vpack.c.bf16 %v889, %v888
      %v906 = vunpack.c.l.b16 %v890
      %v907 = vunpack.c.h.b16 %v890
      %v908 = vunpack.c.l.b16 %v891
      %v909 = vunpack.c.h.b16 %v891
      %v910 = vunpack.c.l.b16 %v892
      %v911 = vunpack.c.h.b16 %v892
      %v912 = vunpack.c.l.b16 %v893
      %v913 = vunpack.c.h.b16 %v893
      %v914 = vunpack.c.l.b16 %v894
      %v915 = vunpack.c.h.b16 %v894
      %v916 = vunpack.c.l.b16 %v895
      %v917 = vunpack.c.h.b16 %v895
      %v918 = vunpack.c.l.b16 %v896
      %v919 = vunpack.c.h.b16 %v896
      %v920 = vunpack.c.l.b16 %v897
      %v921 = vunpack.c.h.b16 %v897
      %v922 = vpack.c.b16 %v906, %v906
      %v923 = vpack.c.b16 %v907, %v907
      %v924 = vpack.c.b16 %v908, %v908
      %v925 = vpack.c.b16 %v909, %v909
      %v926 = vpack.c.b16 %v910, %v910
      %v927 = vpack.c.b16 %v911, %v911
      %v928 = vpack.c.b16 %v912, %v912
      %v929 = vpack.c.b16 %v913, %v913
      %v930 = vpack.c.b16 %v914, %v914
      %v931 = vpack.c.b16 %v915, %v915
      %v932 = vpack.c.b16 %v916, %v916
      %v933 = vpack.c.b16 %v917, %v917
      %v934 = vpack.c.b16 %v918, %v918
      %v935 = vpack.c.b16 %v919, %v919
      %v936 = vpack.c.b16 %v920, %v920
      %v937 = vpack.c.b16 %v921, %v921
      %vm954 = vcmask 60416
      %955 = vst.msk [vmem:[%s240] sm:$0xf] %vm954, %v922
      %956 = vst.msk [vmem:[%s240 + $0x4] sm:$0xf] %vm954, %v923
      %957 = vst.msk [vmem:[%s240 + $0x8] sm:$0xf] %vm954, %v924
      %958 = vst.msk [vmem:[%s240 + $0xc] sm:$0xf] %vm954, %v925
      %959 = vst.msk [vmem:[%s240 + $0x10] sm:$0xf] %vm954, %v926
      %960 = vst.msk [vmem:[%s240 + $0x14] sm:$0xf] %vm954, %v927
      %961 = vst.msk [vmem:[%s240 + $0x18] sm:$0xf] %vm954, %v928
      %962 = vst.msk [vmem:[%s240 + $0x1c] sm:$0xf] %vm954, %v929
      %963 = vst.msk [vmem:[%s240 + $0x20] sm:$0xf] %vm954, %v930
      %964 = vst.msk [vmem:[%s240 + $0x24] sm:$0xf] %vm954, %v931
      %965 = vst.msk [vmem:[%s240 + $0x28] sm:$0xf] %vm954, %v932
      %966 = vst.msk [vmem:[%s240 + $0x2c] sm:$0xf] %vm954, %v933
      %967 = vst.msk [vmem:[%s240 + $0x30] sm:$0xf] %vm954, %v934
      %968 = vst.msk [vmem:[%s240 + $0x34] sm:$0xf] %vm954, %v935
      %969 = vst.msk [vmem:[%s240 + $0x38] sm:$0xf] %vm954, %v936
      %970 = vst.msk [vmem:[%s240 + $0x3c] sm:$0xf] %vm954, %v937
      %s971 = smul.u32 8, %s21
      %p972 = scmp.lt.s32.totalorder %s19, 1
      %s973 = scalar_select %p972, %s19, 1
      %p974 = scmp.lt.s32.totalorder %s971, 15
      %s975 = scalar_select %p974, %s971, 15
      %p976 = scmp.lt.s32.totalorder %s20, 0
      %s977 = scalar_select %p976, %s20, 0
      %s978 = smul.addr %s975, 2
      %s979 = sadd.s32 %s977, %s978
      %s980 = smul.addr %s973, 32
      %s981 = sadd.s32 %s979, %s980
      %s982 = smul.addr %s981, 4
      %s983 = scalar_lea.vmem %s3, %s982
      // Predicated region
      $region33: #{conv_block_forward.4} parent=31 // pred_check
        %p984 = pneg %p133
      $region34: #{conv_block_forward.4} parent=31 // pred_check_branch
        %986 = sbr.rel (%p984) target = $region36
      $region35: #{conv_block_forward.4} parent=31 // pred_region
        %s987 = smul.u32 8, %s21
      $region36: #{conv_block_forward.4} parent=31 // pred_fallthru
        _
    $region32: #{conv_block_forward.4} parent=5 // pred_fallthru
      _
    %p988 = scmp.le.s32.totalorder 2, %s9
    // Predicated region
    $region37: #{conv_block_forward.4} parent=5 // pred_check
      %p989 = pneg %p988
    $region38: #{conv_block_forward.4} parent=5 // pred_check_branch
      %991 = sbr.rel (%p989) target = $region40
    $region39: #{conv_block_forward.4} parent=5 // pred_region
      %s992 = ssub.s32 %s9, 2
      // Predicated region
      $region41: #{conv_block_forward.4} parent=39 // pred_check
        %p993 = pneg %p139
      $region42: #{conv_block_forward.4} parent=39 // pred_check_branch
        %995 = sbr.rel (%p993) target = $region44
      $region43: #{conv_block_forward.4} parent=39 // pred_region
        %s996 = smul.u32 8, %s24
        %p997 = scmp.lt.s32.totalorder %s22, 1
        %s998 = scalar_select %p997, %s22, 1
        %p999 = scmp.lt.s32.totalorder %s996, 15
        %s1000 = scalar_select %p999, %s996, 15
        %p1001 = scmp.lt.s32.totalorder %s23, 0
        %s1002 = scalar_select %p1001, %s23, 0
        %s1003 = smul.addr %s1000, 2
        %s1004 = sadd.s32 %s1002, %s1003
        %s1005 = smul.addr %s998, 32
        %s1006 = sadd.s32 %s1004, %s1005
        %s1007 = smul.addr %s1006, 4
        %s1008 = scalar_lea.vmem %s3, %s1007
      $region44: #{conv_block_forward.4} parent=39 // pred_fallthru
        _
    $region40: #{conv_block_forward.4} parent=5 // pred_fallthru
      _
  $region6: #{conv_block_forward.4} parent=0 // loop_footer
    %s13 = sadd.s32 1, %s9
  $region7: #{conv_block_forward.4} parent=0 // loop_footer_branch
    %8 = sbr.rel target = $region3
  $region8: #{conv_block_forward.4} parent=0 // loop_exit
    _

// kernel: conv_block_forward.5
$region0: #{conv_block_forward.5}
  #allocation0 [shape = 'u32[]', space=smem, size = 0x4, offset = 0x4, fixed_abs, tag = 'smem constant byte address 0x4 - core index']
  #allocation1 [shape = 'u32[144,128]{1,0:T(1,128)}', space=vmem, size = 0x12000, scoped, tag = 'internal scratch']
  %s0 = inlined_call_operand.vmem [shape: bf16[2,18,9,16], index: 0, kind: input, shape index: {}]
  %s1 = inlined_call_operand.vmem [shape: f32[2,8,8,8], index: 1, kind: output, shape index: {}]
  %s2 = sld [smem:[#allocation0]]
  $region37: #{conv_block_forward.5} parent=0
    _
  %s4 = ssub.s32 1, %s2
  %s5 = scalar_select 0, %s4, %s2
  loop: start=0, step=1, limit=4
  $region2: #{conv_block_forward.5} parent=0 // loop_pre_header
    _
  $region3: #{conv_block_forward.5} parent=0 // loop_header
    %s7 = sphi 0, %s11
    %p8 = scmp.ge.s32.totalorder %s7, 4
    %s14 = sphi 0, %s26
    %s15 = sphi 0, %s22
    %s16 = sphi 0, %s14
    %s17 = sphi 0, %s15
    %s18 = sphi 0, %s16
    %s19 = sphi 0, %s17
    %s29 = sphi 0, %s31
    %s32 = sphi 0, %s29
    %s33 = sphi 0, %s32
    %s49 = sphi 0, %s33
    %s57 = sphi 0, %s59
    %s60 = sphi 0, %s57
    %s61 = sphi 0, %s60
    %s77 = sphi 0, %s61
  $region4: #{conv_block_forward.5} parent=0 // loop_header_branch
    %10 = sbr.rel (%p8) target = $region8
  $region5: #{conv_block_forward.5} parent=0 // loop_body
    %s12 = ssub.s32 %s7, 1
    %s13 = ssub.s32 %s7, 2
    %s20 = sadd.s32 1, %s15
    %p21 = scmp.ge.s32.totalorder %s20, 1
    %s22 = scalar_select %p21, 0, %s20
    %s23 = sadd.s32 1, %s14
    %s24 = scalar_select %p21, %s23, %s14
    %p25 = scmp.ge.s32.totalorder %s24, 2
    %s26 = scalar_select %p25, 0, %s24
    %s27 = ssub.s32 %s14, %s26
    %p28 = scmp.eq.s32.totalorder %s27, 0
    %s30 = sadd.s32 %s29, 1
    %s31 = scalar_select %p28, %s29, %s30
    %p34 = pneg %p28
    %p35 = scmp.eq.s32.totalorder %s7, 1
    %p36 = por %p34, %p35
    %p37 = scmp.ne.s32.totalorder %s29, %s32
    %p38 = scmp.eq.s32.totalorder %s7, 0
    %p39 = por %p37, %p38
    %p40 = scmp.ne.s32.totalorder %s29, %s32
    %p41 = scmp.eq.s32.totalorder %s12, 1
    %p42 = por %p40, %p41
    %p43 = scmp.ne.s32.totalorder %s32, %s33
    %p44 = scmp.eq.s32.totalorder %s12, 0
    %p45 = por %p43, %p44
    %p46 = scmp.ne.s32.totalorder %s32, %s33
    %p47 = scmp.eq.s32.totalorder %s13, 1
    %p48 = por %p46, %p47
    %p50 = scmp.ne.s32.totalorder %s33, %s49
    %p51 = scmp.eq.s32.totalorder %s13, 0
    %p52 = por %p50, %p51
    %s53 = ssub.s32 %s14, %s26
    %s54 = ssub.s32 %s15, %s22
    %s55 = sor.u32 %s53, %s54
    %p56 = scmp.eq.s32.totalorder %s55, 0
    %s58 = sadd.s32 %s57, 1
    %s59 = scalar_select %p56, %s57, %s58
    %p62 = pneg %p56
    %p63 = scmp.eq.s32.totalorder %s7, 1
    %p64 = por %p62, %p63
    %p65 = scmp.ne.s32.totalorder %s57, %s60
    %p66 = scmp.eq.s32.totalorder %s7, 0
    %p67 = por %p65, %p66
    %p68 = scmp.ne.s32.totalorder %s57, %s60
    %p69 = scmp.eq.s32.totalorder %s12, 1
    %p70 = por %p68, %p69
    %p71 = scmp.ne.s32.totalorder %s60, %s61
    %p72 = scmp.eq.s32.totalorder %s12, 0
    %p73 = por %p71, %p72
    %p74 = scmp.ne.s32.totalorder %s60, %s61
    %p75 = scmp.eq.s32.totalorder %s13, 1
    %p76 = por %p74, %p75
    %p78 = scmp.ne.s32.totalorder %s61, %s77
    %p79 = scmp.eq.s32.totalorder %s13, 0
    %p80 = por %p78, %p79
    %p81 = scmp.le.s32.totalorder 1, %s7
    %p82 = scmp.lt.s32.totalorder %s7, 3
    %p83 = pnand %p81, %p82
    %p84 = pneg %p83
    // Predicated region
    $region9: #{conv_block_forward.5} parent=5 // pred_check
      _
    $region10: #{conv_block_forward.5} parent=5 // pred_check_branch
      %86 = sbr.rel (%p83) target = $region12
    $region11: #{conv_block_forward.5} parent=5 // pred_region
      %s87 = ssub.s32 %s7, 1
    $region12: #{conv_block_forward.5} parent=5 // pred_fallthru
      _
    %p88 = scmp.lt.s32.totalorder %s7, 2
    // Predicated region
    $region13: #{conv_block_forward.5} parent=5 // pred_check
      %p89 = pneg %p88
    $region14: #{conv_block_forward.5} parent=5 // pred_check_branch
      %91 = sbr.rel (%p89) target = $region16
    $region15: #{conv_block_forward.5} parent=5 // pred_region
      // Predicated region
      $region17: #{conv_block_forward.5} parent=15 // pred_check
        %p92 = pneg %p39
      $region18: #{conv_block_forward.5} parent=15 // pred_check_branch
        %94 = sbr.rel (%p92) target = $region20
      $region19: #{conv_block_forward.5} parent=15 // pred_region
        %p95 = scmp.lt.s32.totalorder %s14, 1
        %s96 = scalar_select %p95, %s14, 1
        %s97 = smul.addr %s96, 36
        %s98 = smul.addr %s97, 4
        %s99 = scalar_lea.vmem %s0, %s98
      $region20: #{conv_block_forward.5} parent=15 // pred_fallthru
        _
    $region16: #{conv_block_forward.5} parent=5 // pred_fallthru
      _
    %p100 = scmp.le.s32.totalorder 1, %s7
    %p101 = scmp.lt.s32.totalorder %s7, 3
    %p102 = pnand %p100, %p101
    %p103 = pneg %p102
    // Predicated region
    $region21: #{conv_block_forward.5} parent=5 // pred_check
      _
    $region22: #{conv_block_forward.5} parent=5 // pred_check_branch
      %105 = sbr.rel (%p102) target = $region24
    $region23: #{conv_block_forward.5} parent=5 // pred_region
      %s106 = ssub.s32 %s7, 1
      %p107 = scmp.lt.s32.totalorder %s16, 1
      %s108 = scalar_select %p107, %s16, 1
      %s109 = smul.addr %s108, 36
      %s110 = smul.addr %s109, 4
      %s111 = scalar_lea.vmem %s0, %s110
      %p112 = pneg %p45
      %p113 = pneg %p42
      %p114 = pneg %p73
      %p115 = pneg %p70
      %s116 = smul.u32 8, %s17
      %p117 = scmp.lt.s32.totalorder %s16, 1
      %s118 = scalar_select %p117, %s16, 1
      %p119 = scmp.lt.s32.totalorder %s116, 7
      %s120 = scalar_select %p119, %s116, 7
      %s121 = smul.addr %s118, 8
      %s122 = sadd.s32 %s120, %s121
      %s123 = smul.addr %s122, 8
      %s124 = scalar_lea.vmem %s1, %s123
      %p125 = scmp.lt.s32.totalorder %s16, 1
      %s126 = scalar_select %p125, %s16, 1
      %s127 = smul.addr %s126, 36
      %s128 = smul.addr %s127, 4
      %s129 = scalar_lea.vmem %s0, %s128
      %s130 = smul.u32 8, %s17
      %p131 = scmp.lt.s32.totalorder %s16, 1
      %s132 = scalar_select %p131, %s16, 1
      %p133 = scmp.lt.s32.totalorder %s130, 7
      %s134 = scalar_select %p133, %s130, 7
      %s135 = smul.addr %s132, 8
      %s136 = sadd.s32 %s134, %s135
      %s137 = smul.addr %s136, 8
      %s138 = scalar_lea.vmem %s1, %s137
      %s139 = smul.u32 8, %s17
      %s140 = smul.u32 %s17, 16
      %s141 = smul.u32 %s140, 2
      %s142 = smul.addr %s141, 4
      %s143 = scalar_lea.vmem %s129, %s142
      %v144 = vld [vmem:[%s143] sm:$0xf]
      %v145 = vld [vmem:[%s143 + $0x4] sm:$0x1]
      %v146 = vld [vmem:[%s143 + $0x8] sm:$0xf]
      %v147 = vld [vmem:[%s143 + $0xc] sm:$0x1]
      %v148 = vld [vmem:[%s143 + $0x10] sm:$0xf]
      %v149 = vld [vmem:[%s143 + $0x14] sm:$0x1]
      %v150 = vld [vmem:[%s143 + $0x18] sm:$0xf]
      %v151 = vld [vmem:[%s143 + $0x1c] sm:$0x1]
      %v152 = vld [vmem:[%s143 + $0x20] sm:$0xf]
      %v153 = vld [vmem:[%s143 + $0x24] sm:$0x1]
      %v154 = vld [vmem:[%s143 + $0x28] sm:$0xf]
      %v155 = vld [vmem:[%s143 + $0x2c] sm:$0x1]
      %v156 = vld [vmem:[%s143 + $0x30] sm:$0xf]
      %v157 = vld [vmem:[%s143 + $0x34] sm:$0x1]
      %v158 = vld [vmem:[%s143 + $0x38] sm:$0xf]
      %v159 = vld [vmem:[%s143 + $0x3c] sm:$0x1]
      %v160 = vld [vmem:[%s143 + $0x40] sm:$0xf]
      %v161 = vld [vmem:[%s143 + $0x44] sm:$0x1]
      %v162 = vld [vmem:[%s143 + $0x48] sm:$0xf]
      %v163 = vld [vmem:[%s143 + $0x4c] sm:$0x1]
      %v164 = vld [vmem:[%s143 + $0x50] sm:$0xf]
      %v165 = vld [vmem:[%s143 + $0x54] sm:$0x1]
      %v166 = vld [vmem:[%s143 + $0x58] sm:$0xf]
      %v167 = vld [vmem:[%s143 + $0x5c] sm:$0x1]
      %v168 = vld [vmem:[%s143 + $0x60] sm:$0xf]
      %v169 = vld [vmem:[%s143 + $0x64] sm:$0x1]
      %v170 = vld [vmem:[%s143 + $0x68] sm:$0xf]
      %v171 = vld [vmem:[%s143 + $0x6c] sm:$0x1]
      %v172 = vld [vmem:[%s143 + $0x70] sm:$0xf]
      %v173 = vld [vmem:[%s143 + $0x74] sm:$0x1]
      %v174 = vld [vmem:[%s143 + $0x78] sm:$0xf]
      %v175 = vld [vmem:[%s143 + $0x7c] sm:$0x1]
      %v176 = vld [vmem:[%s143 + $0x80] sm:$0xf]
      %v177 = vld [vmem:[%s143 + $0x84] sm:$0x1]
      %195 = vrot.lane.b32.xlu0 %v144, 120
      %v196 = vpop.permute.xlu0 %195
      %197 = vrot.lane.b32.xlu0 %v146, 120
      %v198 = vpop.permute.xlu0 %197
      %199 = vrot.lane.b32.xlu0 %v148, 120
      %v200 = vpop.permute.xlu0 %199
      %201 = vrot.lane.b32.xlu0 %v150, 120
      %v202 = vpop.permute.xlu0 %201
      %203 = vrot.lane.b32.xlu0 %v152, 120
      %v204 = vpop.permute.xlu0 %203
      %205 = vrot.lane.b32.xlu0 %v154, 120
      %v206 = vpop.permute.xlu0 %205
      %207 = vrot.lane.b32.xlu0 %v156, 120
      %v208 = vpop.permute.xlu0 %207
      %209 = vrot.lane.b32.xlu0 %v158, 120
      %v210 = vpop.permute.xlu0 %209
      %211 = vrot.lane.b32.xlu0 %v160, 120
      %v212 = vpop.permute.xlu0 %211
      %213 = vrot.lane.b32.xlu0 %v162, 120
      %v214 = vpop.permute.xlu0 %213
      %215 = vrot.lane.b32.xlu0 %v164, 120
      %v216 = vpop.permute.xlu0 %215
      %217 = vrot.lane.b32.xlu0 %v166, 120
      %v218 = vpop.permute.xlu0 %217
      %219 = vrot.lane.b32.xlu0 %v168, 120
      %v220 = vpop.permute.xlu0 %219
      %221 = vrot.lane.b32.xlu0 %v170, 120
      %v222 = vpop.permute.xlu0 %221
      %223 = vrot.lane.b32.xlu0 %v172, 120
      %v224 = vpop.permute.xlu0 %223
      %225 = vrot.lane.b32.xlu0 %v174, 120
      %v226 = vpop.permute.xlu0 %225
      %227 = vrot.lane.b32.xlu0 %v176, 120
      %v228 = vpop.permute.xlu0 %227
      %v246 = vmax.bf16 %v144, %v196
      %v247 = vmax.bf16 %v146, %v198
      %v248 = vmax.bf16 %v148, %v200
      %v249 = vmax.bf16 %v150, %v202
      %v250 = vmax.bf16 %v152, %v204
      %v251 = vmax.bf16 %v154, %v206
      %v252 = vmax.bf16 %v156, %v208
      %v253 = vmax.bf16 %v158, %v210
      %v254 = vmax.bf16 %v160, %v212
      %v255 = vmax.bf16 %v162, %v214
      %v256 = vmax.bf16 %v164, %v216
      %v257 = vmax.bf16 %v166, %v218
      %v258 = vmax.bf16 %v168, %v220
      %v259 = vmax.bf16 %v170, %v222
      %v260 = vmax.bf16 %v172, %v224
      %v261 = vmax.bf16 %v174, %v226
      %v262 = vmax.bf16 %v176, %v228
      %vm263 = vsmask.f32 3328
      %vm264 = vsmask.f32 7440
      %vm265 = vmor %vm263, %vm264
      %v267 = vshrl.u32 %v144, 16
      %v269 = vrot.slane %v267, 4
      %v270 = vshll.u32 %v144, 16
      %v272 = vrot.slane %v270, 5
      %v273 = vor.u32 %v269, %v272
      %v274 = vrot.slane %v273, 4
      %v276 = vshll.u32 %v145, 16
      %v278 = vrot.slane %v276, 5
      %v279 = vsel %vm265, %v274, %v278
      %v281 = vshrl.u32 %v146, 16
      %v283 = vrot.slane %v281, 4
      %v284 = vshll.u32 %v146, 16
      %v286 = vrot.slane %v284, 5
      %v287 = vor.u32 %v283, %v286
      %v288 = vrot.slane %v287, 4
      %v290 = vshll.u32 %v147, 16
      %v292 = vrot.slane %v290, 5
      %v293 = vsel %vm265, %v288, %v292
      %v295 = vshrl.u32 %v148, 16
      %v297 = vrot.slane %v295, 4
      %v298 = vshll.u32 %v148, 16
      %v300 = vrot.slane %v298, 5
      %v301 = vor.u32 %v297, %v300
      %v302 = vrot.slane %v301, 4
      %v304 = vshll.u32 %v149, 16
      %v306 = vrot.slane %v304, 5
      %v307 = vsel %vm265, %v302, %v306
      %v309 = vshrl.u32 %v150, 16
      %v311 = vrot.slane %v309, 4
      %v312 = vshll.u32 %v150, 16
      %v314 = vrot.slane %v312, 5
      %v315 = vor.u32 %v311, %v314
      %v316 = vrot.slane %v315, 4
      %v318 = vshll.u32 %v151, 16
      %v320 = vrot.slane %v318, 5
      %v321 = vsel %vm265, %v316, %v320
      %v323 = vshrl.u32 %v152, 16
      %v325 = vrot.slane %v323, 4
      %v326 = vshll.u32 %v152, 16
      %v328 = vrot.slane %v326, 5
      %v329 = vor.u32 %v325, %v328
      %v330 = vrot.slane %v329, 4
      %v332 = vshll.u32 %v153, 16
      %v334 = vrot.slane %v332, 5
      %v335 = vsel %vm265, %v330, %v334
      %v337 = vshrl.u32 %v154, 16
      %v339 = vrot.slane %v337, 4
      %v340 = vshll.u32 %v154, 16
      %v342 = vrot.slane %v340, 5
      %v343 = vor.u32 %v339, %v342
      %v344 = vrot.slane %v343, 4
      %v346 = vshll.u32 %v155, 16
      %v348 = vrot.slane %v346, 5
      %v349 = vsel %vm265, %v344, %v348
      %v351 = vshrl.u32 %v156, 16
      %v353 = vrot.slane %v351, 4
      %v354 = vshll.u32 %v156, 16
      %v356 = vrot.slane %v354, 5
      %v357 = vor.u32 %v353, %v356
      %v358 = vrot.slane %v357, 4
      %v360 = vshll.u32 %v157, 16
      %v362 = vrot.slane %v360, 5
      %v363 = vsel %vm265, %v358, %v362
      %v365 = vshrl.u32 %v158, 16
      %v367 = vrot.slane %v365, 4
      %v368 = vshll.u32 %v158, 16
      %v370 = vrot.slane %v368, 5
      %v371 = vor.u32 %v367, %v370
      %v372 = vrot.slane %v371, 4
      %v374 = vshll.u32 %v159, 16
      %v376 = vrot.slane %v374, 5
      %v377 = vsel %vm265, %v372, %v376
      %v379 = vshrl.u32 %v160, 16
      %v381 = vrot.slane %v379, 4
      %v382 = vshll.u32 %v160, 16
      %v384 = vrot.slane %v382, 5
      %v385 = vor.u32 %v381, %v384
      %v386 = vrot.slane %v385, 4
      %v388 = vshll.u32 %v161, 16
      %v390 = vrot.slane %v388, 5
      %v391 = vsel %vm265, %v386, %v390
      %v393 = vshrl.u32 %v162, 16
      %v395 = vrot.slane %v393, 4
      %v396 = vshll.u32 %v162, 16
      %v398 = vrot.slane %v396, 5
      %v399 = vor.u32 %v395, %v398
      %v400 = vrot.slane %v399, 4
      %v402 = vshll.u32 %v163, 16
      %v404 = vrot.slane %v402, 5
      %v405 = vsel %vm265, %v400, %v404
      %v407 = vshrl.u32 %v164, 16
      %v409 = vrot.slane %v407, 4
      %v410 = vshll.u32 %v164, 16
      %v412 = vrot.slane %v410, 5
      %v413 = vor.u32 %v409, %v412
      %v414 = vrot.slane %v413, 4
      %v416 = vshll.u32 %v165, 16
      %v418 = vrot.slane %v416, 5
      %v419 = vsel %vm265, %v414, %v418
      %v421 = vshrl.u32 %v166, 16
      %v423 = vrot.slane %v421, 4
      %v424 = vshll.u32 %v166, 16
      %v426 = vrot.slane %v424, 5
      %v427 = vor.u32 %v423, %v426
      %v428 = vrot.slane %v427, 4
      %v430 = vshll.u32 %v167, 16
      %v432 = vrot.slane %v430, 5
      %v433 = vsel %vm265, %v428, %v432
      %v435 = vshrl.u32 %v168, 16
      %v437 = vrot.slane %v435, 4
      %v438 = vshll.u32 %v168, 16
      %v440 = vrot.slane %v438, 5
      %v441 = vor.u32 %v437, %v440
      %v442 = vrot.slane %v441, 4
      %v444 = vshll.u32 %v169, 16
      %v446 = vrot.slane %v444, 5
      %v447 = vsel %vm265, %v442, %v446
      %v449 = vshrl.u32 %v170, 16
      %v451 = vrot.slane %v449, 4
      %v452 = vshll.u32 %v170, 16
      %v454 = vrot.slane %v452, 5
      %v455 = vor.u32 %v451, %v454
      %v456 = vrot.slane %v455, 4
      %v458 = vshll.u32 %v171, 16
      %v460 = vrot.slane %v458, 5
      %v461 = vsel %vm265, %v456, %v460
      %v463 = vshrl.u32 %v172, 16
      %v465 = vrot.slane %v463, 4
      %v466 = vshll.u32 %v172, 16
      %v468 = vrot.slane %v466, 5
      %v469 = vor.u32 %v465, %v468
      %v470 = vrot.slane %v469, 4
      %v472 = vshll.u32 %v173, 16
      %v474 = vrot.slane %v472, 5
      %v475 = vsel %vm265, %v470, %v474
      %v477 = vshrl.u32 %v174, 16
      %v479 = vrot.slane %v477, 4
      %v480 = vshll.u32 %v174, 16
      %v482 = vrot.slane %v480, 5
      %v483 = vor.u32 %v479, %v482
      %v484 = vrot.slane %v483, 4
      %v486 = vshll.u32 %v175, 16
      %v488 = vrot.slane %v486, 5
      %v489 = vsel %vm265, %v484, %v488
      %v491 = vshrl.u32 %v176, 16
      %v493 = vrot.slane %v491, 4
      %v494 = vshll.u32 %v176, 16
      %v496 = vrot.slane %v494, 5
      %v497 = vor.u32 %v493, %v496
      %v498 = vrot.slane %v497, 4
      %v500 = vshll.u32 %v177, 16
      %v502 = vrot.slane %v500, 5
      %v503 = vsel %vm265, %v498, %v502
      %v521 = vmax.bf16 %v246, %v279
      %v522 = vmax.bf16 %v247, %v293
      %v523 = vmax.bf16 %v248, %v307
      %v524 = vmax.bf16 %v249, %v321
      %v525 = vmax.bf16 %v250, %v335
      %v526 = vmax.bf16 %v251, %v349
      %v527 = vmax.bf16 %v252, %v363
      %v528 = vmax.bf16 %v253, %v377
      %v529 = vmax.bf16 %v254, %v391
      %v530 = vmax.bf16 %v255, %v405
      %v531 = vmax.bf16 %v256, %v419
      %v532 = vmax.bf16 %v257, %v433
      %v533 = vmax.bf16 %v258, %v447
      %v534 = vmax.bf16 %v259, %v461
      %v535 = vmax.bf16 %v260, %v475
      %v536 = vmax.bf16 %v261, %v489
      %v537 = vmax.bf16 %v262, %v503
      %v538 = vmax.bf16 %v521, %v522
      %v539 = vmax.bf16 %v523, %v524
      %v540 = vmax.bf16 %v525, %v526
      %v541 = vmax.bf16 %v527, %v528
      %v542 = vmax.bf16 %v529, %v530
      %v543 = vmax.bf16 %v531, %v532
      %v544 = vmax.bf16 %v533, %v534
      %v545 = vmax.bf16 %v535, %v536
      %v546 = vmax.bf16 %v538, %v523
      %v547 = vmax.bf16 %v539, %v525
      %v548 = vmax.bf16 %v540, %v527
      %v549 = vmax.bf16 %v541, %v529
      %v550 = vmax.bf16 %v542, %v531
      %v551 = vmax.bf16 %v543, %v533
      %v552 = vmax.bf16 %v544, %v535
      %v553 = vmax.bf16 %v545, %v537
      %v554 = vunpack.c.l.bf16 %v546
      %v555 = vunpack.c.l.bf16 %v547
      %v556 = vunpack.c.l.bf16 %v548
      %v557 = vunpack.c.l.bf16 %v549
      %v558 = vunpack.c.l.bf16 %v550
      %v559 = vunpack.c.l.bf16 %v551
      %v560 = vunpack.c.l.bf16 %v552
      %v561 = vunpack.c.l.bf16 %v553
      %vm562 = vcmask 64512
      %563 = vst.msk [vmem:[%s138] sm:$0xff] %vm562, %v554
      %564 = vst.msk [vmem:[%s138 + $0x8] sm:$0xff] %vm562, %v555
      %565 = vst.msk [vmem:[%s138 + $0x10] sm:$0xff] %vm562, %v556
      %566 = vst.msk [vmem:[%s138 + $0x18] sm:$0xff] %vm562, %v557
      %567 = vst.msk [vmem:[%s138 + $0x20] sm:$0xff] %vm562, %v558
      %568 = vst.msk [vmem:[%s138 + $0x28] sm:$0xff] %vm562, %v559
      %569 = vst.msk [vmem:[%s138 + $0x30] sm:$0xff] %vm562, %v560
      %570 = vst.msk [vmem:[%s138 + $0x38] sm:$0xff] %vm562, %v561
      %s571 = smul.u32 8, %s17
      %p572 = scmp.lt.s32.totalorder %s16, 1
      %s573 = scalar_select %p572, %s16, 1
      %p574 = scmp.lt.s32.totalorder %s571, 7
      %s575 = scalar_select %p574, %s571, 7
      %s576 = smul.addr %s573, 8
      %s577 = sadd.s32 %s575, %s576
      %s578 = smul.addr %s577, 8
      %s579 = scalar_lea.vmem %s1, %s578
      // Predicated region
      $region25: #{conv_block_forward.5} parent=23 // pred_check
        %p580 = pneg %p70
      $region26: #{conv_block_forward.5} parent=23 // pred_check_branch
        %582 = sbr.rel (%p580) target = $region28
      $region27: #{conv_block_forward.5} parent=23 // pred_region
        %s583 = smul.u32 8, %s17
      $region28: #{conv_block_forward.5} parent=23 // pred_fallthru
        _
    $region24: #{conv_block_forward.5} parent=5 // pred_fallthru
      _
    %p584 = scmp.le.s32.totalorder 2, %s7
    // Predicated region
    $region29: #{conv_block_forward.5} parent=5 // pred_check
      %p585 = pneg %p584
    $region30: #{conv_block_forward.5} parent=5 // pred_check_branch
      %587 = sbr.rel (%p585) target = $region32
    $region31: #{conv_block_forward.5} parent=5 // pred_region
      %s588 = ssub.s32 %s7, 2
      // Predicated region
      $region33: #{conv_block_forward.5} parent=31 // pred_check
        %p589 = pneg %p76
      $region34: #{conv_block_forward.5} parent=31 // pred_check_branch
        %591 = sbr.rel (%p589) target = $region36
      $region35: #{conv_block_forward.5} parent=31 // pred_region
        %s592 = smul.u32 8, %s19
        %p593 = scmp.lt.s32.totalorder %s18, 1
        %s594 = scalar_select %p593, %s18, 1
        %p595 = scmp.lt.s32.totalorder %s592, 7
        %s596 = scalar_select %p595, %s592, 7
        %s597 = smul.addr %s594, 8
        %s598 = sadd.s32 %s596, %s597
        %s599 = smul.addr %s598, 8
        %s600 = scalar_lea.vmem %s1, %s599
      $region36: #{conv_block_forward.5} parent=31 // pred_fallthru
        _
    $region32: #{conv_block_forward.5} parent=5 // pred_fallthru
      _
  $region6: #{conv_block_forward.5} parent=0 // loop_footer
    %s11 = sadd.s32 1, %s7
  $region7: #{conv_block_forward.5} parent=0 // loop_footer_branch
    %6 = sbr.rel target = $region3
  $region8: #{conv_block_forward.5} parent=0 // loop_exit
    _

</llo_original>
